<compile_context>
chip_gen: v7x
topology: tpu7x:2x2x1
jax: 0.10.0
libtpu: 0.0.40
codegen_flags: <defaults>
</compile_context>

<pallas_src>
import functools

import jax
import jax.numpy as jnp
from jax import lax
from jax.experimental import pallas as pl
from jax.experimental.pallas import tpu as pltpu


def rnn_cls_kernel(xf_ref, xb_ref, mf_ref, mb_ref,
                   whf_ref, whb_ref,
                   wlf_ref, wlb_ref, bl_ref,
                   y1h_ref, bw_ref,
                   logits_ref, loss_ref,
                   hf_scr, hb_scr):
    c = pl.program_id(0)
    n_chunks = pl.num_programs(0)
    Tc = xf_ref.shape[0]

    @pl.when(c == 0)
    def _init():
        hf_scr[...] = jnp.zeros_like(hf_scr)
        hb_scr[...] = jnp.zeros_like(hb_scr)

    whf = whf_ref[...]              # (H, H) bf16
    whb = whb_ref[...]              # (H, H) bf16

    def step(i, carry):
        h_f, h_b = carry
        # Forward consumes local timestep i of its (forward-ordered) chunk;
        # backward consumes local timestep Tc-1-i of its (reverse-ordered) chunk.
        j = Tc - 1 - i
        x_f = xf_ref[i]             # (B, H) f32, biases already folded in
        m_f = mf_ref[i]             # (B, 1) f32
        x_b = xb_ref[j]
        m_b = mb_ref[j]

        pre_f = x_f + jnp.dot(h_f.astype(jnp.bfloat16), whf,
                              preferred_element_type=jnp.float32)
        pre_b = x_b + jnp.dot(h_b.astype(jnp.bfloat16), whb,
                              preferred_element_type=jnp.float32)
        h_f_new = jnp.tanh(pre_f)
        h_b_new = jnp.tanh(pre_b)
        # mask=0 freezes the state (== pack_padded_sequence semantics).
        h_f = jnp.where(m_f > 0.0, h_f_new, h_f)
        h_b = jnp.where(m_b > 0.0, h_b_new, h_b)
        return h_f, h_b

    unroll = True if Tc <= 32 else 8
    h_f, h_b = lax.fori_loop(0, Tc, step, (hf_scr[...], hb_scr[...]),
                             unroll=unroll)
    hf_scr[...] = h_f
    hb_scr[...] = h_b

    @pl.when(c == n_chunks - 1)
    def _finish():
        # Linear over concat(h_fwd, h_bwd) == two split-weight matmuls.
        logits = (jnp.dot(h_f, wlf_ref[...], preferred_element_type=jnp.float32)
                  + jnp.dot(h_b, wlb_ref[...], preferred_element_type=jnp.float32)
                  + bl_ref[...])                                   # (B, C)
        logits_ref[...] = logits
        # Mean cross-entropy over real batch rows (bw = 1/B_real or 0 for pads).
        mx = jnp.max(logits, axis=1, keepdims=True)
        lse = mx + jnp.log(jnp.sum(jnp.exp(logits - mx), axis=1, keepdims=True))
        tgt = jnp.sum(logits * y1h_ref[...], axis=1, keepdims=True)
        loss_ref[...] = jnp.sum((lse - tgt) * bw_ref[...], axis=0, keepdims=True)


@functools.partial(jax.jit, static_argnames=("num_labels", "time_chunk"))
def rnn_cls_forward(input_ids, input_mask, labels, params,
                    num_labels=2, time_chunk=128):
    """Returns (loss, logits) matching RNN_CLS.forward."""
    (emb_table,
     w_ih_f, w_hh_f, b_ih_f, b_hh_f,
     w_ih_b, w_hh_b, b_ih_b, b_hh_b,
     w_lin, b_lin) = params

    B, T = input_ids.shape
    E = emb_table.shape[1]
    H = w_hh_f.shape[0]
    C = num_labels

    # ---- XLA glue: embedding gather + hoisted input projections -------------
    emb = jnp.take(emb_table, input_ids, axis=0).astype(jnp.float32)  # (B,T,E)
    emb_bf = emb.reshape(B * T, E).astype(jnp.bfloat16)
    wif = w_ih_f.T.astype(jnp.bfloat16)           # (E, H)
    wib = w_ih_b.T.astype(jnp.bfloat16)
    bf = (b_ih_f + b_hh_f).astype(jnp.float32)    # biases folded into projection
    bb = (b_ih_b + b_hh_b).astype(jnp.float32)
    xf = (jnp.dot(emb_bf, wif, preferred_element_type=jnp.float32)
          .reshape(B, T, H) + bf)
    xb = (jnp.dot(emb_bf, wib, preferred_element_type=jnp.float32)
          .reshape(B, T, H) + bb)

    # time-major for the recurrence
    xf = jnp.transpose(xf, (1, 0, 2))                              # (T,B,H)
    xb = jnp.transpose(xb, (1, 0, 2))
    m = jnp.transpose(input_mask.astype(jnp.float32))[..., None]   # (T,B,1)

    # ---- pad batch to sublane multiple, time to a chunk multiple ------------
    Bp = -(-B // 8) * 8
    Tc = int(min(time_chunk, T))
    Tp = -(-T // Tc) * Tc
    n_chunks = Tp // Tc
    pad_t, pad_b = Tp - T, Bp - B
    xf = jnp.pad(xf, ((0, pad_t), (0, pad_b), (0, 0)))
    xb = jnp.pad(xb, ((0, pad_t), (0, pad_b), (0, 0)))
    m = jnp.pad(m, ((0, pad_t), (0, pad_b), (0, 0)))   # pads have mask=0

    whf = w_hh_f.T.astype(jnp.bfloat16)           # (H, H)
    whb = w_hh_b.T.astype(jnp.bfloat16)
    wl_T = w_lin.T.astype(jnp.float32)            # (2H, C)
    wlf, wlb = wl_T[:H], wl_T[H:]
    bl = b_lin.astype(jnp.float32)[None, :]       # (1, C)

    y1h = jnp.pad(jax.nn.one_hot(labels, C, dtype=jnp.float32),
                  ((0, pad_b), (0, 0)))           # (Bp, C)
    bw = (jnp.arange(Bp) < B).astype(jnp.float32)[:, None] / B      # (Bp, 1)

    # ---- scheduler / VMEM hints ----------------------------------------------
    flops = 4 * Tp * Bp * H * H + 4 * Bp * H * C
    transcendentals = 2 * Tp * Bp * H + Bp * C
    bytes_accessed = (2 * Tp * Bp * H * 4 + 2 * Tp * Bp * 4
                      + 2 * H * H * 2 + 2 * H * C * 4 + C * 4
                      + 2 * Bp * C * 4 + Bp * 4 + 4)
    vmem_needed = (2 * 2 * Tc * Bp * H * 4        # xf/xb blocks, double-buffered
                   + 2 * 2 * Tc * Bp * 4          # mask blocks, double-buffered
                   + 2 * H * H * 2 + 2 * H * C * 4 + C * 4
                   + 2 * Bp * C * 4 + Bp * 4
                   + 2 * Bp * H * 4               # hidden-state scratch
                   + 2 * (Bp * C * 4 + 4))        # outputs
    vmem_limit = int(min(max(4 * vmem_needed, 8 * 2 ** 20), 64 * 2 ** 20))

    logits_p, loss = pl.pallas_call(
        rnn_cls_kernel,
        out_shape=(jax.ShapeDtypeStruct((Bp, C), jnp.float32),
                   jax.ShapeDtypeStruct((1, 1), jnp.float32)),
        grid_spec=pltpu.PrefetchScalarGridSpec(
            num_scalar_prefetch=0,
            grid=(n_chunks,),
            in_specs=[
                pl.BlockSpec((Tc, Bp, H), lambda c: (c, 0, 0)),              # xf
                pl.BlockSpec((Tc, Bp, H),
                             lambda c: (n_chunks - 1 - c, 0, 0)),            # xb (reversed)
                pl.BlockSpec((Tc, Bp, 1), lambda c: (c, 0, 0)),              # mask fwd
                pl.BlockSpec((Tc, Bp, 1),
                             lambda c: (n_chunks - 1 - c, 0, 0)),            # mask bwd
                pl.BlockSpec((H, H), lambda c: (0, 0)),                      # W_hh fwd
                pl.BlockSpec((H, H), lambda c: (0, 0)),                      # W_hh bwd
                pl.BlockSpec((H, C), lambda c: (0, 0)),                      # W_lin fwd half
                pl.BlockSpec((H, C), lambda c: (0, 0)),                      # W_lin bwd half
                pl.BlockSpec((1, C), lambda c: (0, 0)),                      # b_lin
                pl.BlockSpec((Bp, C), lambda c: (0, 0)),                     # one-hot labels
                pl.BlockSpec((Bp, 1), lambda c: (0, 0)),                     # batch loss weight
            ],
            out_specs=(pl.BlockSpec((Bp, C), lambda c: (0, 0)),
                       pl.BlockSpec((1, 1), lambda c: (0, 0))),
            scratch_shapes=[pltpu.VMEM((Bp, H), jnp.float32),
                            pltpu.VMEM((Bp, H), jnp.float32)]),
        compiler_params=pltpu.CompilerParams(
            dimension_semantics=("arbitrary",),
            vmem_limit_bytes=vmem_limit),
        cost_estimate=pl.CostEstimate(flops=flops,
                                      transcendentals=transcendentals,
                                      bytes_accessed=bytes_accessed),
    )(xf, xb, m, m, whf, whb, wlf, wlb, bl, y1h, bw)

    return loss[0, 0], logits_p[:B]


def init_params(key, vocab_size, embedding_size, hidden_size, num_labels):
    ks = jax.random.split(key, 11)
    s_rnn = 1.0 / jnp.sqrt(hidden_size)
    s_lin = 1.0 / jnp.sqrt(2 * hidden_size)
    u = lambda k, shape, s: jax.random.uniform(k, shape, jnp.float32, -s, s)
    emb_table = jax.random.normal(ks[0], (vocab_size, embedding_size), jnp.float32)
    w_ih_f = u(ks[1], (hidden_size, embedding_size), s_rnn)
    w_hh_f = u(ks[2], (hidden_size, hidden_size), s_rnn)
    b_ih_f = u(ks[3], (hidden_size,), s_rnn)
    b_hh_f = u(ks[4], (hidden_size,), s_rnn)
    w_ih_b = u(ks[5], (hidden_size, embedding_size), s_rnn)
    w_hh_b = u(ks[6], (hidden_size, hidden_size), s_rnn)
    b_ih_b = u(ks[7], (hidden_size,), s_rnn)
    b_hh_b = u(ks[8], (hidden_size,), s_rnn)
    w_lin = u(ks[9], (num_labels, 2 * hidden_size), s_lin)
    b_lin = u(ks[10], (num_labels,), s_lin)
    return (emb_table,
            w_ih_f, w_hh_f, b_ih_f, b_hh_f,
            w_ih_b, w_hh_b, b_ih_b, b_hh_b,
            w_lin, b_lin)


if __name__ == "__main__":
    VOCAB, EMB, HID, LABELS = 50, 32, 32, 2
    B, T = 2, 8

    key = jax.random.PRNGKey(0)
    k_param, k_ids = jax.random.split(key)
    params = init_params(k_param, VOCAB, EMB, HID, LABELS)

    input_ids = jax.random.randint(k_ids, (B, T), 0, VOCAB, dtype=jnp.int32)
    lengths = jnp.array([8, 5], dtype=jnp.int32)                 # right-padded
    input_mask = (jnp.arange(T)[None, :] < lengths[:, None]).astype(jnp.int32)
    labels = jnp.array([0, 1], dtype=jnp.int32)

    loss, logits = rnn_cls_forward(input_ids, input_mask, labels, params,
                                   num_labels=LABELS, time_chunk=4)
    jax.block_until_ready((loss, logits))
    print("KERNEL_OK")
</pallas_src>

<mosaic_0001>
module attributes {stable_mosaic.version = 11 : i64} {
  func.func @rnn_cls_kernel(%arg0: i32, %arg1: memref<4x8x32xf32, #tpu.memory_space<vmem>>, %arg2: memref<4x8x32xf32, #tpu.memory_space<vmem>>, %arg3: memref<4x8x1xf32, #tpu.memory_space<vmem>>, %arg4: memref<4x8x1xf32, #tpu.memory_space<vmem>>, %arg5: memref<32x32xbf16, #tpu.memory_space<vmem>>, %arg6: memref<32x32xbf16, #tpu.memory_space<vmem>>, %arg7: memref<32x2xf32, #tpu.memory_space<vmem>>, %arg8: memref<32x2xf32, #tpu.memory_space<vmem>>, %arg9: memref<1x2xf32, #tpu.memory_space<vmem>>, %arg10: memref<8x2xf32, #tpu.memory_space<vmem>>, %arg11: memref<8x1xf32, #tpu.memory_space<vmem>>, %arg12: memref<8x2xf32, #tpu.memory_space<vmem>>, %arg13: memref<1x1xf32, #tpu.memory_space<vmem>>, %arg14: memref<8x32xf32, #tpu.memory_space<vmem>>, %arg15: memref<8x32xf32, #tpu.memory_space<vmem>>) attributes {dimension_semantics = [#tpu.dimension_semantics<arbitrary>], iteration_bounds = array<i64: 2>, scalar_prefetch = 0 : i64, scratch_operands = 2 : i64, tpu.core_type = #tpu.core_type<tc>, window_params = [{transform_indices = @transform_0, window_bounds = array<i64: 4, 8, 32>}, {transform_indices = @transform_1, window_bounds = array<i64: 4, 8, 32>}, {transform_indices = @transform_2, window_bounds = array<i64: 4, 8, 1>}, {transform_indices = @transform_3, window_bounds = array<i64: 4, 8, 1>}, {pipeline_mode = #tpu.pipeline_mode<synchronous>, transform_indices = @transform_4, window_bounds = array<i64: 32, 32>}, {pipeline_mode = #tpu.pipeline_mode<synchronous>, transform_indices = @transform_5, window_bounds = array<i64: 32, 32>}, {pipeline_mode = #tpu.pipeline_mode<synchronous>, transform_indices = @transform_6, window_bounds = array<i64: 32, 2>}, {pipeline_mode = #tpu.pipeline_mode<synchronous>, transform_indices = @transform_7, window_bounds = array<i64: 32, 2>}, {pipeline_mode = #tpu.pipeline_mode<synchronous>, transform_indices = @transform_8, window_bounds = array<i64: 1, 2>}, {pipeline_mode = #tpu.pipeline_mode<synchronous>, transform_indices = @transform_9, window_bounds = array<i64: 8, 2>}, {pipeline_mode = #tpu.pipeline_mode<synchronous>, transform_indices = @transform_10, window_bounds = array<i64: 8, 1>}, {pipeline_mode = #tpu.pipeline_mode<synchronous>, transform_indices = @transform_11, window_bounds = array<i64: 8, 2>}, {pipeline_mode = #tpu.pipeline_mode<synchronous>, transform_indices = @transform_12, window_bounds = array<i64: 1, 1>}]} {
    %c0_i32 = arith.constant 0 : i32
    %0 = arith.cmpi eq, %arg0, %c0_i32 : i32
    %1 = arith.extui %0 : i1 to i32
    %c0_i32_0 = arith.constant 0 : i32
    %2 = arith.cmpi ne, %1, %c0_i32_0 : i32
    scf.if %2 {
      %cst_66 = arith.constant 0.000000e+00 : f32
      %136 = vector.broadcast %cst_66 : f32 to vector<8x32xf32>
      %c0_67 = arith.constant 0 : index
      %c0_68 = arith.constant 0 : index
      %137 = vector.load %arg14[%c0_67, %c0_68] : memref<8x32xf32, #tpu.memory_space<vmem>>, vector<8x32xf32>
      tpu.vector_store %arg14[%c0_67, %c0_68], %136 {strides = array<i32>} : memref<8x32xf32, #tpu.memory_space<vmem>>, vector<8x32xf32>,
      %cst_69 = arith.constant 0.000000e+00 : f32
      %138 = vector.broadcast %cst_69 : f32 to vector<8x32xf32>
      %c0_70 = arith.constant 0 : index
      %c0_71 = arith.constant 0 : index
      %139 = vector.load %arg15[%c0_70, %c0_71] : memref<8x32xf32, #tpu.memory_space<vmem>>, vector<8x32xf32>
      tpu.vector_store %arg15[%c0_70, %c0_71], %138 {strides = array<i32>} : memref<8x32xf32, #tpu.memory_space<vmem>>, vector<8x32xf32>,
    } else {
    }
    %c0 = arith.constant 0 : index
    %c0_1 = arith.constant 0 : index
    %3 = vector.load %arg5[%c0, %c0_1] : memref<32x32xbf16, #tpu.memory_space<vmem>>, vector<32x32xbf16>
    %c0_2 = arith.constant 0 : index
    %c0_3 = arith.constant 0 : index
    %4 = vector.load %arg6[%c0_2, %c0_3] : memref<32x32xbf16, #tpu.memory_space<vmem>>, vector<32x32xbf16>
    %c0_4 = arith.constant 0 : index
    %c0_5 = arith.constant 0 : index
    %5 = vector.load %arg14[%c0_4, %c0_5] : memref<8x32xf32, #tpu.memory_space<vmem>>, vector<8x32xf32>
    %c0_6 = arith.constant 0 : index
    %c0_7 = arith.constant 0 : index
    %6 = vector.load %arg15[%c0_6, %c0_7] : memref<8x32xf32, #tpu.memory_space<vmem>>, vector<8x32xf32>
    %c0_i32_8 = arith.constant 0 : i32
    %c3_i32 = arith.constant 3 : i32
    %7 = arith.subi %c3_i32, %c0_i32_8 : i32
    %8 = arith.index_cast %c0_i32_8 : i32 to index
    %c0_9 = arith.constant 0 : index
    %c0_10 = arith.constant 0 : index
    %9 = vector.load %arg1[%8, %c0_9, %c0_10] : memref<4x8x32xf32, #tpu.memory_space<vmem>>, vector<1x8x32xf32>
    %10 = vector.shape_cast %9 : vector<1x8x32xf32> to vector<8x32xf32>
    %11 = arith.index_cast %c0_i32_8 : i32 to index
    %c0_11 = arith.constant 0 : index
    %c0_12 = arith.constant 0 : index
    %12 = vector.load %arg3[%11, %c0_11, %c0_12] : memref<4x8x1xf32, #tpu.memory_space<vmem>>, vector<1x8x1xf32>
    %13 = vector.shape_cast %12 : vector<1x8x1xf32> to vector<8x1xf32>
    %14 = arith.index_cast %7 : i32 to index
    %c0_13 = arith.constant 0 : index
    %c0_14 = arith.constant 0 : index
    %15 = vector.load %arg2[%14, %c0_13, %c0_14] : memref<4x8x32xf32, #tpu.memory_space<vmem>>, vector<1x8x32xf32>
    %16 = vector.shape_cast %15 : vector<1x8x32xf32> to vector<8x32xf32>
    %17 = arith.index_cast %7 : i32 to index
    %c0_15 = arith.constant 0 : index
    %c0_16 = arith.constant 0 : index
    %18 = vector.load %arg4[%17, %c0_15, %c0_16] : memref<4x8x1xf32, #tpu.memory_space<vmem>>, vector<1x8x1xf32>
    %19 = vector.shape_cast %18 : vector<1x8x1xf32> to vector<8x1xf32>
    %20 = arith.truncf %5 : vector<8x32xf32> to vector<8x32xbf16>
    %cst = arith.constant dense<0.000000e+00> : vector<8x32xf32>
    %21 = tpu.matmul %20, %3, %cst {dimension_numbers = #tpu.dot_dimension_numbers<[1], [0], [0], [1], [0, 0, 1, 1], [], []>} : vector<8x32xbf16>, vector<32x32xbf16>, vector<8x32xf32> -> vector<8x32xf32>
    %22 = arith.addf %10, %21 : vector<8x32xf32>
    %23 = arith.truncf %6 : vector<8x32xf32> to vector<8x32xbf16>
    %cst_17 = arith.constant dense<0.000000e+00> : vector<8x32xf32>
    %24 = tpu.matmul %23, %4, %cst_17 {dimension_numbers = #tpu.dot_dimension_numbers<[1], [0], [0], [1], [0, 0, 1, 1], [], []>} : vector<8x32xbf16>, vector<32x32xbf16>, vector<8x32xf32> -> vector<8x32xf32>
    %25 = arith.addf %16, %24 : vector<8x32xf32>
    %26 = math.tanh %22 : vector<8x32xf32>
    %27 = math.tanh %25 : vector<8x32xf32>
    %cst_18 = arith.constant 0.000000e+00 : f32
    %28 = vector.broadcast %cst_18 : f32 to vector<8x1xf32>
    %29 = arith.cmpf ogt, %13, %28 : vector<8x1xf32>
    %30 = vector.shape_cast %29 : vector<8x1xi1> to vector<8x1xi1>
    %31 = vector.broadcast %30 : vector<8x1xi1> to vector<8x32xi1>
    %32 = arith.select %31, %26, %5 : vector<8x32xi1>, vector<8x32xf32>
    %cst_19 = arith.constant 0.000000e+00 : f32
    %33 = vector.broadcast %cst_19 : f32 to vector<8x1xf32>
    %34 = arith.cmpf ogt, %19, %33 : vector<8x1xf32>
    %35 = vector.shape_cast %34 : vector<8x1xi1> to vector<8x1xi1>
    %36 = vector.broadcast %35 : vector<8x1xi1> to vector<8x32xi1>
    %37 = arith.select %36, %27, %6 : vector<8x32xi1>, vector<8x32xf32>
    %c1_i32 = arith.constant 1 : i32
    %c3_i32_20 = arith.constant 3 : i32
    %38 = arith.subi %c3_i32_20, %c1_i32 : i32
    %39 = arith.index_cast %c1_i32 : i32 to index
    %c0_21 = arith.constant 0 : index
    %c0_22 = arith.constant 0 : index
    %40 = vector.load %arg1[%39, %c0_21, %c0_22] : memref<4x8x32xf32, #tpu.memory_space<vmem>>, vector<1x8x32xf32>
    %41 = vector.shape_cast %40 : vector<1x8x32xf32> to vector<8x32xf32>
    %42 = arith.index_cast %c1_i32 : i32 to index
    %c0_23 = arith.constant 0 : index
    %c0_24 = arith.constant 0 : index
    %43 = vector.load %arg3[%42, %c0_23, %c0_24] : memref<4x8x1xf32, #tpu.memory_space<vmem>>, vector<1x8x1xf32>
    %44 = vector.shape_cast %43 : vector<1x8x1xf32> to vector<8x1xf32>
    %45 = arith.index_cast %38 : i32 to index
    %c0_25 = arith.constant 0 : index
    %c0_26 = arith.constant 0 : index
    %46 = vector.load %arg2[%45, %c0_25, %c0_26] : memref<4x8x32xf32, #tpu.memory_space<vmem>>, vector<1x8x32xf32>
    %47 = vector.shape_cast %46 : vector<1x8x32xf32> to vector<8x32xf32>
    %48 = arith.index_cast %38 : i32 to index
    %c0_27 = arith.constant 0 : index
    %c0_28 = arith.constant 0 : index
    %49 = vector.load %arg4[%48, %c0_27, %c0_28] : memref<4x8x1xf32, #tpu.memory_space<vmem>>, vector<1x8x1xf32>
    %50 = vector.shape_cast %49 : vector<1x8x1xf32> to vector<8x1xf32>
    %51 = arith.truncf %32 : vector<8x32xf32> to vector<8x32xbf16>
    %cst_29 = arith.constant dense<0.000000e+00> : vector<8x32xf32>
    %52 = tpu.matmul %51, %3, %cst_29 {dimension_numbers = #tpu.dot_dimension_numbers<[1], [0], [0], [1], [0, 0, 1, 1], [], []>} : vector<8x32xbf16>, vector<32x32xbf16>, vector<8x32xf32> -> vector<8x32xf32>
    %53 = arith.addf %41, %52 : vector<8x32xf32>
    %54 = arith.truncf %37 : vector<8x32xf32> to vector<8x32xbf16>
    %cst_30 = arith.constant dense<0.000000e+00> : vector<8x32xf32>
    %55 = tpu.matmul %54, %4, %cst_30 {dimension_numbers = #tpu.dot_dimension_numbers<[1], [0], [0], [1], [0, 0, 1, 1], [], []>} : vector<8x32xbf16>, vector<32x32xbf16>, vector<8x32xf32> -> vector<8x32xf32>
    %56 = arith.addf %47, %55 : vector<8x32xf32>
    %57 = math.tanh %53 : vector<8x32xf32>
    %58 = math.tanh %56 : vector<8x32xf32>
    %cst_31 = arith.constant 0.000000e+00 : f32
    %59 = vector.broadcast %cst_31 : f32 to vector<8x1xf32>
    %60 = arith.cmpf ogt, %44, %59 : vector<8x1xf32>
    %61 = vector.shape_cast %60 : vector<8x1xi1> to vector<8x1xi1>
    %62 = vector.broadcast %61 : vector<8x1xi1> to vector<8x32xi1>
    %63 = arith.select %62, %57, %32 : vector<8x32xi1>, vector<8x32xf32>
    %cst_32 = arith.constant 0.000000e+00 : f32
    %64 = vector.broadcast %cst_32 : f32 to vector<8x1xf32>
    %65 = arith.cmpf ogt, %50, %64 : vector<8x1xf32>
    %66 = vector.shape_cast %65 : vector<8x1xi1> to vector<8x1xi1>
    %67 = vector.broadcast %66 : vector<8x1xi1> to vector<8x32xi1>
    %68 = arith.select %67, %58, %37 : vector<8x32xi1>, vector<8x32xf32>
    %c2_i32 = arith.constant 2 : i32
    %c3_i32_33 = arith.constant 3 : i32
    %69 = arith.subi %c3_i32_33, %c2_i32 : i32
    %70 = arith.index_cast %c2_i32 : i32 to index
    %c0_34 = arith.constant 0 : index
    %c0_35 = arith.constant 0 : index
    %71 = vector.load %arg1[%70, %c0_34, %c0_35] : memref<4x8x32xf32, #tpu.memory_space<vmem>>, vector<1x8x32xf32>
    %72 = vector.shape_cast %71 : vector<1x8x32xf32> to vector<8x32xf32>
    %73 = arith.index_cast %c2_i32 : i32 to index
    %c0_36 = arith.constant 0 : index
    %c0_37 = arith.constant 0 : index
    %74 = vector.load %arg3[%73, %c0_36, %c0_37] : memref<4x8x1xf32, #tpu.memory_space<vmem>>, vector<1x8x1xf32>
    %75 = vector.shape_cast %74 : vector<1x8x1xf32> to vector<8x1xf32>
    %76 = arith.index_cast %69 : i32 to index
    %c0_38 = arith.constant 0 : index
    %c0_39 = arith.constant 0 : index
    %77 = vector.load %arg2[%76, %c0_38, %c0_39] : memref<4x8x32xf32, #tpu.memory_space<vmem>>, vector<1x8x32xf32>
    %78 = vector.shape_cast %77 : vector<1x8x32xf32> to vector<8x32xf32>
    %79 = arith.index_cast %69 : i32 to index
    %c0_40 = arith.constant 0 : index
    %c0_41 = arith.constant 0 : index
    %80 = vector.load %arg4[%79, %c0_40, %c0_41] : memref<4x8x1xf32, #tpu.memory_space<vmem>>, vector<1x8x1xf32>
    %81 = vector.shape_cast %80 : vector<1x8x1xf32> to vector<8x1xf32>
    %82 = arith.truncf %63 : vector<8x32xf32> to vector<8x32xbf16>
    %cst_42 = arith.constant dense<0.000000e+00> : vector<8x32xf32>
    %83 = tpu.matmul %82, %3, %cst_42 {dimension_numbers = #tpu.dot_dimension_numbers<[1], [0], [0], [1], [0, 0, 1, 1], [], []>} : vector<8x32xbf16>, vector<32x32xbf16>, vector<8x32xf32> -> vector<8x32xf32>
    %84 = arith.addf %72, %83 : vector<8x32xf32>
    %85 = arith.truncf %68 : vector<8x32xf32> to vector<8x32xbf16>
    %cst_43 = arith.constant dense<0.000000e+00> : vector<8x32xf32>
    %86 = tpu.matmul %85, %4, %cst_43 {dimension_numbers = #tpu.dot_dimension_numbers<[1], [0], [0], [1], [0, 0, 1, 1], [], []>} : vector<8x32xbf16>, vector<32x32xbf16>, vector<8x32xf32> -> vector<8x32xf32>
    %87 = arith.addf %78, %86 : vector<8x32xf32>
    %88 = math.tanh %84 : vector<8x32xf32>
    %89 = math.tanh %87 : vector<8x32xf32>
    %cst_44 = arith.constant 0.000000e+00 : f32
    %90 = vector.broadcast %cst_44 : f32 to vector<8x1xf32>
    %91 = arith.cmpf ogt, %75, %90 : vector<8x1xf32>
    %92 = vector.shape_cast %91 : vector<8x1xi1> to vector<8x1xi1>
    %93 = vector.broadcast %92 : vector<8x1xi1> to vector<8x32xi1>
    %94 = arith.select %93, %88, %63 : vector<8x32xi1>, vector<8x32xf32>
    %cst_45 = arith.constant 0.000000e+00 : f32
    %95 = vector.broadcast %cst_45 : f32 to vector<8x1xf32>
    %96 = arith.cmpf ogt, %81, %95 : vector<8x1xf32>
    %97 = vector.shape_cast %96 : vector<8x1xi1> to vector<8x1xi1>
    %98 = vector.broadcast %97 : vector<8x1xi1> to vector<8x32xi1>
    %99 = arith.select %98, %89, %68 : vector<8x32xi1>, vector<8x32xf32>
    %c3_i32_46 = arith.constant 3 : i32
    %c3_i32_47 = arith.constant 3 : i32
    %100 = arith.subi %c3_i32_47, %c3_i32_46 : i32
    %101 = arith.index_cast %c3_i32_46 : i32 to index
    %c0_48 = arith.constant 0 : index
    %c0_49 = arith.constant 0 : index
    %102 = vector.load %arg1[%101, %c0_48, %c0_49] : memref<4x8x32xf32, #tpu.memory_space<vmem>>, vector<1x8x32xf32>
    %103 = vector.shape_cast %102 : vector<1x8x32xf32> to vector<8x32xf32>
    %104 = arith.index_cast %c3_i32_46 : i32 to index
    %c0_50 = arith.constant 0 : index
    %c0_51 = arith.constant 0 : index
    %105 = vector.load %arg3[%104, %c0_50, %c0_51] : memref<4x8x1xf32, #tpu.memory_space<vmem>>, vector<1x8x1xf32>
    %106 = vector.shape_cast %105 : vector<1x8x1xf32> to vector<8x1xf32>
    %107 = arith.index_cast %100 : i32 to index
    %c0_52 = arith.constant 0 : index
    %c0_53 = arith.constant 0 : index
    %108 = vector.load %arg2[%107, %c0_52, %c0_53] : memref<4x8x32xf32, #tpu.memory_space<vmem>>, vector<1x8x32xf32>
    %109 = vector.shape_cast %108 : vector<1x8x32xf32> to vector<8x32xf32>
    %110 = arith.index_cast %100 : i32 to index
    %c0_54 = arith.constant 0 : index
    %c0_55 = arith.constant 0 : index
    %111 = vector.load %arg4[%110, %c0_54, %c0_55] : memref<4x8x1xf32, #tpu.memory_space<vmem>>, vector<1x8x1xf32>
    %112 = vector.shape_cast %111 : vector<1x8x1xf32> to vector<8x1xf32>
    %113 = arith.truncf %94 : vector<8x32xf32> to vector<8x32xbf16>
    %cst_56 = arith.constant dense<0.000000e+00> : vector<8x32xf32>
    %114 = tpu.matmul %113, %3, %cst_56 {dimension_numbers = #tpu.dot_dimension_numbers<[1], [0], [0], [1], [0, 0, 1, 1], [], []>} : vector<8x32xbf16>, vector<32x32xbf16>, vector<8x32xf32> -> vector<8x32xf32>
    %115 = arith.addf %103, %114 : vector<8x32xf32>
    %116 = arith.truncf %99 : vector<8x32xf32> to vector<8x32xbf16>
    %cst_57 = arith.constant dense<0.000000e+00> : vector<8x32xf32>
    %117 = tpu.matmul %116, %4, %cst_57 {dimension_numbers = #tpu.dot_dimension_numbers<[1], [0], [0], [1], [0, 0, 1, 1], [], []>} : vector<8x32xbf16>, vector<32x32xbf16>, vector<8x32xf32> -> vector<8x32xf32>
    %118 = arith.addf %109, %117 : vector<8x32xf32>
    %119 = math.tanh %115 : vector<8x32xf32>
    %120 = math.tanh %118 : vector<8x32xf32>
    %cst_58 = arith.constant 0.000000e+00 : f32
    %121 = vector.broadcast %cst_58 : f32 to vector<8x1xf32>
    %122 = arith.cmpf ogt, %106, %121 : vector<8x1xf32>
    %123 = vector.shape_cast %122 : vector<8x1xi1> to vector<8x1xi1>
    %124 = vector.broadcast %123 : vector<8x1xi1> to vector<8x32xi1>
    %125 = arith.select %124, %119, %94 : vector<8x32xi1>, vector<8x32xf32>
    %cst_59 = arith.constant 0.000000e+00 : f32
    %126 = vector.broadcast %cst_59 : f32 to vector<8x1xf32>
    %127 = arith.cmpf ogt, %112, %126 : vector<8x1xf32>
    %128 = vector.shape_cast %127 : vector<8x1xi1> to vector<8x1xi1>
    %129 = vector.broadcast %128 : vector<8x1xi1> to vector<8x32xi1>
    %130 = arith.select %129, %120, %99 : vector<8x32xi1>, vector<8x32xf32>
    %c4_i32 = arith.constant 4 : i32
    %c0_60 = arith.constant 0 : index
    %c0_61 = arith.constant 0 : index
    %131 = vector.load %arg14[%c0_60, %c0_61] : memref<8x32xf32, #tpu.memory_space<vmem>>, vector<8x32xf32>
    tpu.vector_store %arg14[%c0_60, %c0_61], %125 {strides = array<i32>} : memref<8x32xf32, #tpu.memory_space<vmem>>, vector<8x32xf32>,
    %c0_62 = arith.constant 0 : index
    %c0_63 = arith.constant 0 : index
    %132 = vector.load %arg15[%c0_62, %c0_63] : memref<8x32xf32, #tpu.memory_space<vmem>>, vector<8x32xf32>
    tpu.vector_store %arg15[%c0_62, %c0_63], %130 {strides = array<i32>} : memref<8x32xf32, #tpu.memory_space<vmem>>, vector<8x32xf32>,
    %c1_i32_64 = arith.constant 1 : i32
    %133 = arith.cmpi eq, %arg0, %c1_i32_64 : i32
    %134 = arith.extui %133 : i1 to i32
    %c0_i32_65 = arith.constant 0 : i32
    %135 = arith.cmpi ne, %134, %c0_i32_65 : i32
    scf.if %135 {
      %c0_66 = arith.constant 0 : index
      %c0_67 = arith.constant 0 : index
      %136 = vector.load %arg7[%c0_66, %c0_67] : memref<32x2xf32, #tpu.memory_space<vmem>>, vector<32x2xf32>
      %cst_68 = arith.constant dense<0.000000e+00> : vector<8x2xf32>
      %137 = tpu.matmul %125, %136, %cst_68 {dimension_numbers = #tpu.dot_dimension_numbers<[1], [0], [0], [1], [0, 0, 1, 1], [], []>} : vector<8x32xf32>, vector<32x2xf32>, vector<8x2xf32> -> vector<8x2xf32>
      %c0_69 = arith.constant 0 : index
      %c0_70 = arith.constant 0 : index
      %138 = vector.load %arg8[%c0_69, %c0_70] : memref<32x2xf32, #tpu.memory_space<vmem>>, vector<32x2xf32>
      %cst_71 = arith.constant dense<0.000000e+00> : vector<8x2xf32>
      %139 = tpu.matmul %130, %138, %cst_71 {dimension_numbers = #tpu.dot_dimension_numbers<[1], [0], [0], [1], [0, 0, 1, 1], [], []>} : vector<8x32xf32>, vector<32x2xf32>, vector<8x2xf32> -> vector<8x2xf32>
      %140 = arith.addf %137, %139 : vector<8x2xf32>
      %c0_72 = arith.constant 0 : index
      %c0_73 = arith.constant 0 : index
      %141 = vector.load %arg9[%c0_72, %c0_73] : memref<1x2xf32, #tpu.memory_space<vmem>>, vector<1x2xf32>
      %142 = vector.broadcast %141 : vector<1x2xf32> to vector<8x2xf32>
      %143 = arith.addf %140, %142 : vector<8x2xf32>
      %c0_74 = arith.constant 0 : index
      %c0_75 = arith.constant 0 : index
      %144 = vector.load %arg12[%c0_74, %c0_75] : memref<8x2xf32, #tpu.memory_space<vmem>>, vector<8x2xf32>
      tpu.vector_store %arg12[%c0_74, %c0_75], %143 {strides = array<i32>} : memref<8x2xf32, #tpu.memory_space<vmem>>, vector<8x2xf32>,
      %cst_76 = arith.constant dense<0xFF800000> : vector<8xf32>
      %145 = vector.multi_reduction <maximumf>, %143, %cst_76 [1] : vector<8x2xf32> to vector<8xf32>
      %146 = vector.shape_cast %145 : vector<8xf32> to vector<8x1xf32>
      %147 = vector.broadcast %146 : vector<8x1xf32> to vector<8x2xf32>
      %148 = arith.subf %143, %147 : vector<8x2xf32>
      %149 = math.exp %148 : vector<8x2xf32>
      %cst_77 = arith.constant dense<0.000000e+00> : vector<8xf32>
      %150 = vector.multi_reduction <add>, %149, %cst_77 [1] : vector<8x2xf32> to vector<8xf32>
      %151 = vector.shape_cast %150 : vector<8xf32> to vector<8x1xf32>
      %152 = math.log %151 : vector<8x1xf32>
      %153 = arith.addf %146, %152 : vector<8x1xf32>
      %c0_78 = arith.constant 0 : index
      %c0_79 = arith.constant 0 : index
      %154 = vector.load %arg10[%c0_78, %c0_79] : memref<8x2xf32, #tpu.memory_space<vmem>>, vector<8x2xf32>
      %155 = arith.mulf %143, %154 : vector<8x2xf32>
      %cst_80 = arith.constant dense<0.000000e+00> : vector<8xf32>
      %156 = vector.multi_reduction <add>, %155, %cst_80 [1] : vector<8x2xf32> to vector<8xf32>
      %157 = vector.shape_cast %156 : vector<8xf32> to vector<8x1xf32>
      %158 = arith.subf %153, %157 : vector<8x1xf32>
      %c0_81 = arith.constant 0 : index
      %c0_82 = arith.constant 0 : index
      %159 = vector.load %arg11[%c0_81, %c0_82] : memref<8x1xf32, #tpu.memory_space<vmem>>, vector<8x1xf32>
      %160 = arith.mulf %158, %159 : vector<8x1xf32>
      %cst_83 = arith.constant dense<0.000000e+00> : vector<1xf32>
      %161 = vector.multi_reduction <add>, %160, %cst_83 [0] : vector<8x1xf32> to vector<1xf32>
      %162 = vector.shape_cast %161 : vector<1xf32> to vector<1x1xf32>
      %c0_84 = arith.constant 0 : index
      %c0_85 = arith.constant 0 : index
      %163 = vector.load %arg13[%c0_84, %c0_85] : memref<1x1xf32, #tpu.memory_space<vmem>>, vector<1x1xf32>
      tpu.vector_store %arg13[%c0_84, %c0_85], %162 {strides = array<i32>} : memref<1x1xf32, #tpu.memory_space<vmem>>, vector<1x1xf32>,
    } else {
    }
    return
  }
  func.func @transform_0(%arg0: i32) -> (i32, i32, i32) {
    %c0_i32 = arith.constant 0 : i32
    %c0_i32_0 = arith.constant 0 : i32
    %c0_i32_1 = arith.constant 0 : i32
    return %arg0, %c0_i32, %c0_i32_0 : i32, i32, i32
  }
  func.func @transform_1(%arg0: i32) -> (i32, i32, i32) {
    %c1_i32 = arith.constant 1 : i32
    %0 = arith.subi %c1_i32, %arg0 : i32
    %c0_i32 = arith.constant 0 : i32
    %c0_i32_0 = arith.constant 0 : i32
    %c0_i32_1 = arith.constant 0 : i32
    return %0, %c0_i32, %c0_i32_0 : i32, i32, i32
  }
  func.func @transform_2(%arg0: i32) -> (i32, i32, i32) {
    %c0_i32 = arith.constant 0 : i32
    %c0_i32_0 = arith.constant 0 : i32
    %c0_i32_1 = arith.constant 0 : i32
    return %arg0, %c0_i32, %c0_i32_0 : i32, i32, i32
  }
  func.func @transform_3(%arg0: i32) -> (i32, i32, i32) {
    %c1_i32 = arith.constant 1 : i32
    %0 = arith.subi %c1_i32, %arg0 : i32
    %c0_i32 = arith.constant 0 : i32
    %c0_i32_0 = arith.constant 0 : i32
    %c0_i32_1 = arith.constant 0 : i32
    return %0, %c0_i32, %c0_i32_0 : i32, i32, i32
  }
  func.func @transform_4(%arg0: i32) -> (i32, i32) {
    %c0_i32 = arith.constant 0 : i32
    %c0_i32_0 = arith.constant 0 : i32
    %c0_i32_1 = arith.constant 0 : i32
    return %c0_i32, %c0_i32_0 : i32, i32
  }
  func.func @transform_5(%arg0: i32) -> (i32, i32) {
    %c0_i32 = arith.constant 0 : i32
    %c0_i32_0 = arith.constant 0 : i32
    %c0_i32_1 = arith.constant 0 : i32
    return %c0_i32, %c0_i32_0 : i32, i32
  }
  func.func @transform_6(%arg0: i32) -> (i32, i32) {
    %c0_i32 = arith.constant 0 : i32
    %c0_i32_0 = arith.constant 0 : i32
    %c0_i32_1 = arith.constant 0 : i32
    return %c0_i32, %c0_i32_0 : i32, i32
  }
  func.func @transform_7(%arg0: i32) -> (i32, i32) {
    %c0_i32 = arith.constant 0 : i32
    %c0_i32_0 = arith.constant 0 : i32
    %c0_i32_1 = arith.constant 0 : i32
    return %c0_i32, %c0_i32_0 : i32, i32
  }
  func.func @transform_8(%arg0: i32) -> (i32, i32) {
    %c0_i32 = arith.constant 0 : i32
    %c0_i32_0 = arith.constant 0 : i32
    %c0_i32_1 = arith.constant 0 : i32
    return %c0_i32, %c0_i32_0 : i32, i32
  }
  func.func @transform_9(%arg0: i32) -> (i32, i32) {
    %c0_i32 = arith.constant 0 : i32
    %c0_i32_0 = arith.constant 0 : i32
    %c0_i32_1 = arith.constant 0 : i32
    return %c0_i32, %c0_i32_0 : i32, i32
  }
  func.func @transform_10(%arg0: i32) -> (i32, i32) {
    %c0_i32 = arith.constant 0 : i32
    %c0_i32_0 = arith.constant 0 : i32
    %c0_i32_1 = arith.constant 0 : i32
    return %c0_i32, %c0_i32_0 : i32, i32
  }
  func.func @transform_11(%arg0: i32) -> (i32, i32) {
    %c0_i32 = arith.constant 0 : i32
    %c0_i32_0 = arith.constant 0 : i32
    %c0_i32_1 = arith.constant 0 : i32
    return %c0_i32, %c0_i32_0 : i32, i32
  }
  func.func @transform_12(%arg0: i32) -> (i32, i32) {
    %c0_i32 = arith.constant 0 : i32
    %c0_i32_0 = arith.constant 0 : i32
    %c0_i32_1 = arith.constant 0 : i32
    return %c0_i32, %c0_i32_0 : i32, i32
  }
}

</mosaic_0001>

<llo_original>
// kernel: rnn_cls_forward.1
$region0: #{rnn_cls_forward.1}
  #allocation0 [shape = 'u32[]', space=smem, size = 0x4, offset = 0x4, fixed_abs, tag = 'smem constant byte address 0x4 - core index']
  #allocation1 [shape = 'u32[144,128]{1,0:T(1,128)}', space=vmem, size = 0x12000, scoped, tag = 'internal scratch']
  #allocation2 [shape = 'f32[8,32]{1,0:T(8,128)}', space=vmem, size = 0x1000, scoped, tag = 'scratch operand']
  #allocation3 [shape = 'f32[8,32]{1,0:T(8,128)}', space=vmem, size = 0x1000, scoped, tag = 'scratch operand']
  %s0 = inlined_call_operand.vmem [shape: f32[8,8,32], index: 0, kind: input, shape index: {}]
  %s1 = inlined_call_operand.vmem [shape: f32[8,8,32], index: 1, kind: input, shape index: {}]
  %s2 = inlined_call_operand.vmem [shape: f32[8,8,1], index: 2, kind: input, shape index: {}, may-alias: {2,3}]
  %s3 = inlined_call_operand.vmem [shape: f32[8,8,1], index: 3, kind: input, shape index: {}, may-alias: {2,3}]
  %s4 = inlined_call_operand.vmem [shape: bf16[32,32], index: 4, kind: input, shape index: {}]
  %s5 = inlined_call_operand.vmem [shape: bf16[32,32], index: 5, kind: input, shape index: {}]
  %s6 = inlined_call_operand.vmem [shape: f32[32,2], index: 6, kind: input, shape index: {}]
  %s7 = inlined_call_operand.vmem [shape: f32[32,2], index: 7, kind: input, shape index: {}]
  %s8 = inlined_call_operand.vmem [shape: f32[1,2], index: 8, kind: input, shape index: {}]
  %s9 = inlined_call_operand.vmem [shape: f32[8,2], index: 9, kind: input, shape index: {}]
  %s10 = inlined_call_operand.vmem [shape: f32[8,1], index: 10, kind: input, shape index: {}]
  %s11 = inlined_call_operand.vmem [shape: f32[8,2], index: 11, kind: output, shape index: {0}]
  %s12 = inlined_call_operand.hbm [shape: f32[1,1], index: 12, kind: output, shape index: {1}]
  %13 = xla_tuple %s11, %s12
  %s14 = sld [smem:[#allocation0]]
  $region93: #{rnn_cls_forward.1} parent=0
    _
  %s16 = ssub.s32 1, %s14
  %s17 = scalar_select 0, %s16, %s14
  $region1: #{rnn_cls_forward.1} parent=0
    #allocation4 [shape = 'u8[512]{0}', space=vmem, size = 0x400, scoped, tag = 'output window, operand 1, single buffered']
    #allocation5 [shape = 's32[2]{0}', space=sflag, size = 0x8, scoped, tag = 'scoped memory for rnn_cls_forward.1']
    %18 = vsyncpa [#allocation5], 0
    loop: start=0, step=1, limit=4
    $region2: #{rnn_cls_forward.1} parent=1 // loop_pre_header
      _
    $region3: #{rnn_cls_forward.1} parent=1 // loop_header
      %s20 = sphi 0, %s24
      %p21 = scmp.ge.s32.totalorder %s20, 4
      %s30 = sphi 0, %s32
      %s33 = sphi 0, %s30
      %s34 = sphi 0, %s33
      %s50 = sphi 0, %s34
      %s58 = sphi 0, %s60
      %s61 = sphi 0, %s58
      %s62 = sphi 0, %s61
      %s78 = sphi 0, %s62
      %s84 = sphi 0, %s86
      %s87 = sphi 0, %s84
      %s88 = sphi 0, %s87
      %s104 = sphi 0, %s88
      %s112 = sphi 0, %s114
      %s115 = sphi 0, %s112
      %s116 = sphi 0, %s115
      %s132 = sphi 0, %s116
      %s136 = sphi 0, %s136
      %s138 = sphi 0, %s136
      %s139 = sphi 0, %s138
      %s153 = sphi 0, %s139
      %s157 = sphi 0, %s157
      %s159 = sphi 0, %s157
      %s160 = sphi 0, %s159
      %s174 = sphi 0, %s160
      %s178 = sphi 0, %s178
      %s180 = sphi 0, %s178
      %s181 = sphi 0, %s180
      %s195 = sphi 0, %s181
      %s199 = sphi 0, %s199
      %s201 = sphi 0, %s199
      %s202 = sphi 0, %s201
      %s216 = sphi 0, %s202
      %s220 = sphi 0, %s220
      %s222 = sphi 0, %s220
      %s223 = sphi 0, %s222
      %s237 = sphi 0, %s223
      %s241 = sphi 0, %s241
      %s243 = sphi 0, %s241
      %s244 = sphi 0, %s243
      %s258 = sphi 0, %s244
      %s262 = sphi 0, %s262
      %s264 = sphi 0, %s262
      %s265 = sphi 0, %s264
      %s279 = sphi 0, %s265
      %s283 = sphi 0, %s283
      %s285 = sphi 0, %s283
      %s286 = sphi 0, %s285
      %s300 = sphi 0, %s286
      %s304 = sphi 0, %s304
      %s306 = sphi 0, %s304
      %s307 = sphi 0, %s306
      %s321 = sphi 0, %s307
    $region4: #{rnn_cls_forward.1} parent=1 // loop_header_branch
      %23 = sbr.rel (%p21) target = $region8
    $region5: #{rnn_cls_forward.1} parent=1 // loop_body
      %s25 = ssub.s32 %s20, 1
      %s26 = ssub.s32 %s20, 2
      %s27 = sadd.s32 %s20, 1
      %s28 = ssub.s32 %s20, %s27
      %p29 = scmp.eq.s32.totalorder %s28, 0
      %s31 = sadd.s32 %s30, 1
      %s32 = scalar_select %p29, %s30, %s31
      %p35 = pneg %p29
      %p36 = scmp.eq.s32.totalorder %s20, 1
      %p37 = por %p35, %p36
      %p38 = scmp.ne.s32.totalorder %s30, %s33
      %p39 = scmp.eq.s32.totalorder %s20, 0
      %p40 = por %p38, %p39
      %p41 = scmp.ne.s32.totalorder %s30, %s33
      %p42 = scmp.eq.s32.totalorder %s25, 1
      %p43 = por %p41, %p42
      %p44 = scmp.ne.s32.totalorder %s33, %s34
      %p45 = scmp.eq.s32.totalorder %s25, 0
      %p46 = por %p44, %p45
      %p47 = scmp.ne.s32.totalorder %s33, %s34
      %p48 = scmp.eq.s32.totalorder %s26, 1
      %p49 = por %p47, %p48
      %p51 = scmp.ne.s32.totalorder %s34, %s50
      %p52 = scmp.eq.s32.totalorder %s26, 0
      %p53 = por %p51, %p52
      %s54 = ssub.s32 1, %s20
      %s55 = ssub.s32 1, %s27
      %s56 = ssub.s32 %s54, %s55
      %p57 = scmp.eq.s32.totalorder %s56, 0
      %s59 = sadd.s32 %s58, 1
      %s60 = scalar_select %p57, %s58, %s59
      %p63 = pneg %p57
      %p64 = scmp.eq.s32.totalorder %s20, 1
      %p65 = por %p63, %p64
      %p66 = scmp.ne.s32.totalorder %s58, %s61
      %p67 = scmp.eq.s32.totalorder %s20, 0
      %p68 = por %p66, %p67
      %p69 = scmp.ne.s32.totalorder %s58, %s61
      %p70 = scmp.eq.s32.totalorder %s25, 1
      %p71 = por %p69, %p70
      %p72 = scmp.ne.s32.totalorder %s61, %s62
      %p73 = scmp.eq.s32.totalorder %s25, 0
      %p74 = por %p72, %p73
      %p75 = scmp.ne.s32.totalorder %s61, %s62
      %p76 = scmp.eq.s32.totalorder %s26, 1
      %p77 = por %p75, %p76
      %p79 = scmp.ne.s32.totalorder %s62, %s78
      %p80 = scmp.eq.s32.totalorder %s26, 0
      %p81 = por %p79, %p80
      %s82 = ssub.s32 %s20, %s27
      %p83 = scmp.eq.s32.totalorder %s82, 0
      %s85 = sadd.s32 %s84, 1
      %s86 = scalar_select %p83, %s84, %s85
      %p89 = pneg %p83
      %p90 = scmp.eq.s32.totalorder %s20, 1
      %p91 = por %p89, %p90
      %p92 = scmp.ne.s32.totalorder %s84, %s87
      %p93 = scmp.eq.s32.totalorder %s20, 0
      %p94 = por %p92, %p93
      %p95 = scmp.ne.s32.totalorder %s84, %s87
      %p96 = scmp.eq.s32.totalorder %s25, 1
      %p97 = por %p95, %p96
      %p98 = scmp.ne.s32.totalorder %s87, %s88
      %p99 = scmp.eq.s32.totalorder %s25, 0
      %p100 = por %p98, %p99
      %p101 = scmp.ne.s32.totalorder %s87, %s88
      %p102 = scmp.eq.s32.totalorder %s26, 1
      %p103 = por %p101, %p102
      %p105 = scmp.ne.s32.totalorder %s88, %s104
      %p106 = scmp.eq.s32.totalorder %s26, 0
      %p107 = por %p105, %p106
      %s108 = ssub.s32 1, %s20
      %s109 = ssub.s32 1, %s27
      %s110 = ssub.s32 %s108, %s109
      %p111 = scmp.eq.s32.totalorder %s110, 0
      %s113 = sadd.s32 %s112, 1
      %s114 = scalar_select %p111, %s112, %s113
      %p117 = pneg %p111
      %p118 = scmp.eq.s32.totalorder %s20, 1
      %p119 = por %p117, %p118
      %p120 = scmp.ne.s32.totalorder %s112, %s115
      %p121 = scmp.eq.s32.totalorder %s20, 0
      %p122 = por %p120, %p121
      %p123 = scmp.ne.s32.totalorder %s112, %s115
      %p124 = scmp.eq.s32.totalorder %s25, 1
      %p125 = por %p123, %p124
      %p126 = scmp.ne.s32.totalorder %s115, %s116
      %p127 = scmp.eq.s32.totalorder %s25, 0
      %p128 = por %p126, %p127
      %p129 = scmp.ne.s32.totalorder %s115, %s116
      %p130 = scmp.eq.s32.totalorder %s26, 1
      %p131 = por %p129, %p130
      %p133 = scmp.ne.s32.totalorder %s116, %s132
      %p134 = scmp.eq.s32.totalorder %s26, 0
      %p135 = por %p133, %p134
      %s137 = sadd.s32 %s136, 1
      %p140 = scmp.eq.s32.totalorder %s20, 1
      %p141 = scmp.ne.s32.totalorder %s136, %s138
      %p142 = scmp.eq.s32.totalorder %s20, 0
      %p143 = por %p141, %p142
      %p144 = scmp.ne.s32.totalorder %s136, %s138
      %p145 = scmp.eq.s32.totalorder %s25, 1
      %p146 = por %p144, %p145
      %p147 = scmp.ne.s32.totalorder %s138, %s139
      %p148 = scmp.eq.s32.totalorder %s25, 0
      %p149 = por %p147, %p148
      %p150 = scmp.ne.s32.totalorder %s138, %s139
      %p151 = scmp.eq.s32.totalorder %s26, 1
      %p152 = por %p150, %p151
      %p154 = scmp.ne.s32.totalorder %s139, %s153
      %p155 = scmp.eq.s32.totalorder %s26, 0
      %p156 = por %p154, %p155
      %s158 = sadd.s32 %s157, 1
      %p161 = scmp.eq.s32.totalorder %s20, 1
      %p162 = scmp.ne.s32.totalorder %s157, %s159
      %p163 = scmp.eq.s32.totalorder %s20, 0
      %p164 = por %p162, %p163
      %p165 = scmp.ne.s32.totalorder %s157, %s159
      %p166 = scmp.eq.s32.totalorder %s25, 1
      %p167 = por %p165, %p166
      %p168 = scmp.ne.s32.totalorder %s159, %s160
      %p169 = scmp.eq.s32.totalorder %s25, 0
      %p170 = por %p168, %p169
      %p171 = scmp.ne.s32.totalorder %s159, %s160
      %p172 = scmp.eq.s32.totalorder %s26, 1
      %p173 = por %p171, %p172
      %p175 = scmp.ne.s32.totalorder %s160, %s174
      %p176 = scmp.eq.s32.totalorder %s26, 0
      %p177 = por %p175, %p176
      %s179 = sadd.s32 %s178, 1
      %p182 = scmp.eq.s32.totalorder %s20, 1
      %p183 = scmp.ne.s32.totalorder %s178, %s180
      %p184 = scmp.eq.s32.totalorder %s20, 0
      %p185 = por %p183, %p184
      %p186 = scmp.ne.s32.totalorder %s178, %s180
      %p187 = scmp.eq.s32.totalorder %s25, 1
      %p188 = por %p186, %p187
      %p189 = scmp.ne.s32.totalorder %s180, %s181
      %p190 = scmp.eq.s32.totalorder %s25, 0
      %p191 = por %p189, %p190
      %p192 = scmp.ne.s32.totalorder %s180, %s181
      %p193 = scmp.eq.s32.totalorder %s26, 1
      %p194 = por %p192, %p193
      %p196 = scmp.ne.s32.totalorder %s181, %s195
      %p197 = scmp.eq.s32.totalorder %s26, 0
      %p198 = por %p196, %p197
      %s200 = sadd.s32 %s199, 1
      %p203 = scmp.eq.s32.totalorder %s20, 1
      %p204 = scmp.ne.s32.totalorder %s199, %s201
      %p205 = scmp.eq.s32.totalorder %s20, 0
      %p206 = por %p204, %p205
      %p207 = scmp.ne.s32.totalorder %s199, %s201
      %p208 = scmp.eq.s32.totalorder %s25, 1
      %p209 = por %p207, %p208
      %p210 = scmp.ne.s32.totalorder %s201, %s202
      %p211 = scmp.eq.s32.totalorder %s25, 0
      %p212 = por %p210, %p211
      %p213 = scmp.ne.s32.totalorder %s201, %s202
      %p214 = scmp.eq.s32.totalorder %s26, 1
      %p215 = por %p213, %p214
      %p217 = scmp.ne.s32.totalorder %s202, %s216
      %p218 = scmp.eq.s32.totalorder %s26, 0
      %p219 = por %p217, %p218
      %s221 = sadd.s32 %s220, 1
      %p224 = scmp.eq.s32.totalorder %s20, 1
      %p225 = scmp.ne.s32.totalorder %s220, %s222
      %p226 = scmp.eq.s32.totalorder %s20, 0
      %p227 = por %p225, %p226
      %p228 = scmp.ne.s32.totalorder %s220, %s222
      %p229 = scmp.eq.s32.totalorder %s25, 1
      %p230 = por %p228, %p229
      %p231 = scmp.ne.s32.totalorder %s222, %s223
      %p232 = scmp.eq.s32.totalorder %s25, 0
      %p233 = por %p231, %p232
      %p234 = scmp.ne.s32.totalorder %s222, %s223
      %p235 = scmp.eq.s32.totalorder %s26, 1
      %p236 = por %p234, %p235
      %p238 = scmp.ne.s32.totalorder %s223, %s237
      %p239 = scmp.eq.s32.totalorder %s26, 0
      %p240 = por %p238, %p239
      %s242 = sadd.s32 %s241, 1
      %p245 = scmp.eq.s32.totalorder %s20, 1
      %p246 = scmp.ne.s32.totalorder %s241, %s243
      %p247 = scmp.eq.s32.totalorder %s20, 0
      %p248 = por %p246, %p247
      %p249 = scmp.ne.s32.totalorder %s241, %s243
      %p250 = scmp.eq.s32.totalorder %s25, 1
      %p251 = por %p249, %p250
      %p252 = scmp.ne.s32.totalorder %s243, %s244
      %p253 = scmp.eq.s32.totalorder %s25, 0
      %p254 = por %p252, %p253
      %p255 = scmp.ne.s32.totalorder %s243, %s244
      %p256 = scmp.eq.s32.totalorder %s26, 1
      %p257 = por %p255, %p256
      %p259 = scmp.ne.s32.totalorder %s244, %s258
      %p260 = scmp.eq.s32.totalorder %s26, 0
      %p261 = por %p259, %p260
      %s263 = sadd.s32 %s262, 1
      %p266 = scmp.eq.s32.totalorder %s20, 1
      %p267 = scmp.ne.s32.totalorder %s262, %s264
      %p268 = scmp.eq.s32.totalorder %s20, 0
      %p269 = por %p267, %p268
      %p270 = scmp.ne.s32.totalorder %s262, %s264
      %p271 = scmp.eq.s32.totalorder %s25, 1
      %p272 = por %p270, %p271
      %p273 = scmp.ne.s32.totalorder %s264, %s265
      %p274 = scmp.eq.s32.totalorder %s25, 0
      %p275 = por %p273, %p274
      %p276 = scmp.ne.s32.totalorder %s264, %s265
      %p277 = scmp.eq.s32.totalorder %s26, 1
      %p278 = por %p276, %p277
      %p280 = scmp.ne.s32.totalorder %s265, %s279
      %p281 = scmp.eq.s32.totalorder %s26, 0
      %p282 = por %p280, %p281
      %s284 = sadd.s32 %s283, 1
      %p287 = scmp.eq.s32.totalorder %s20, 1
      %p288 = scmp.ne.s32.totalorder %s283, %s285
      %p289 = scmp.eq.s32.totalorder %s20, 0
      %p290 = por %p288, %p289
      %p291 = scmp.ne.s32.totalorder %s283, %s285
      %p292 = scmp.eq.s32.totalorder %s25, 1
      %p293 = por %p291, %p292
      %p294 = scmp.ne.s32.totalorder %s285, %s286
      %p295 = scmp.eq.s32.totalorder %s25, 0
      %p296 = por %p294, %p295
      %p297 = scmp.ne.s32.totalorder %s285, %s286
      %p298 = scmp.eq.s32.totalorder %s26, 1
      %p299 = por %p297, %p298
      %p301 = scmp.ne.s32.totalorder %s286, %s300
      %p302 = scmp.eq.s32.totalorder %s26, 0
      %p303 = por %p301, %p302
      %s305 = sadd.s32 %s304, 1
      %p308 = scmp.eq.s32.totalorder %s20, 1
      %p309 = scmp.ne.s32.totalorder %s304, %s306
      %p310 = scmp.eq.s32.totalorder %s20, 0
      %p311 = por %p309, %p310
      %p312 = scmp.ne.s32.totalorder %s304, %s306
      %p313 = scmp.eq.s32.totalorder %s25, 1
      %p314 = por %p312, %p313
      %p315 = scmp.ne.s32.totalorder %s306, %s307
      %p316 = scmp.eq.s32.totalorder %s25, 0
      %p317 = por %p315, %p316
      %p318 = scmp.ne.s32.totalorder %s306, %s307
      %p319 = scmp.eq.s32.totalorder %s26, 1
      %p320 = por %p318, %p319
      %p322 = scmp.ne.s32.totalorder %s307, %s321
      %p323 = scmp.eq.s32.totalorder %s26, 0
      %p324 = por %p322, %p323
      %p325 = scmp.le.s32.totalorder 1, %s20
      %p326 = scmp.lt.s32.totalorder %s20, 3
      %p327 = pnand %p325, %p326
      %p328 = pneg %p327
      // Predicated region
      $region9: #{rnn_cls_forward.1} parent=5 // pred_check
        _
      $region10: #{rnn_cls_forward.1} parent=5 // pred_check_branch
        %330 = sbr.rel (%p327) target = $region12
      $region11: #{rnn_cls_forward.1} parent=5 // pred_region
        %s331 = ssub.s32 %s20, 1
        // Predicated region
        $region13: #{rnn_cls_forward.1} parent=11 // pred_check
          %p332 = pneg %p149
        $region14: #{rnn_cls_forward.1} parent=11 // pred_check_branch
          %334 = sbr.rel (%p332) target = $region16
        $region15: #{rnn_cls_forward.1} parent=11 // pred_region
          _
        $region16: #{rnn_cls_forward.1} parent=11 // pred_fallthru
          _
        // Predicated region
        $region17: #{rnn_cls_forward.1} parent=11 // pred_check
          %p335 = pneg %p170
        $region18: #{rnn_cls_forward.1} parent=11 // pred_check_branch
          %337 = sbr.rel (%p335) target = $region20
        $region19: #{rnn_cls_forward.1} parent=11 // pred_region
          _
        $region20: #{rnn_cls_forward.1} parent=11 // pred_fallthru
          _
        // Predicated region
        $region21: #{rnn_cls_forward.1} parent=11 // pred_check
          %p338 = pneg %p191
        $region22: #{rnn_cls_forward.1} parent=11 // pred_check_branch
          %340 = sbr.rel (%p338) target = $region24
        $region23: #{rnn_cls_forward.1} parent=11 // pred_region
          _
        $region24: #{rnn_cls_forward.1} parent=11 // pred_fallthru
          _
        // Predicated region
        $region25: #{rnn_cls_forward.1} parent=11 // pred_check
          %p341 = pneg %p212
        $region26: #{rnn_cls_forward.1} parent=11 // pred_check_branch
          %343 = sbr.rel (%p341) target = $region28
        $region27: #{rnn_cls_forward.1} parent=11 // pred_region
          _
        $region28: #{rnn_cls_forward.1} parent=11 // pred_fallthru
          _
        // Predicated region
        $region29: #{rnn_cls_forward.1} parent=11 // pred_check
          %p344 = pneg %p233
        $region30: #{rnn_cls_forward.1} parent=11 // pred_check_branch
          %346 = sbr.rel (%p344) target = $region32
        $region31: #{rnn_cls_forward.1} parent=11 // pred_region
          _
        $region32: #{rnn_cls_forward.1} parent=11 // pred_fallthru
          _
        // Predicated region
        $region33: #{rnn_cls_forward.1} parent=11 // pred_check
          %p347 = pneg %p254
        $region34: #{rnn_cls_forward.1} parent=11 // pred_check_branch
          %349 = sbr.rel (%p347) target = $region36
        $region35: #{rnn_cls_forward.1} parent=11 // pred_region
          _
        $region36: #{rnn_cls_forward.1} parent=11 // pred_fallthru
          _
        // Predicated region
        $region37: #{rnn_cls_forward.1} parent=11 // pred_check
          %p350 = pneg %p275
        $region38: #{rnn_cls_forward.1} parent=11 // pred_check_branch
          %352 = sbr.rel (%p350) target = $region40
        $region39: #{rnn_cls_forward.1} parent=11 // pred_region
          _
        $region40: #{rnn_cls_forward.1} parent=11 // pred_fallthru
          _
      $region12: #{rnn_cls_forward.1} parent=5 // pred_fallthru
        _
      %p353 = scmp.lt.s32.totalorder %s20, 2
      // Predicated region
      $region41: #{rnn_cls_forward.1} parent=5 // pred_check
        %p354 = pneg %p353
      $region42: #{rnn_cls_forward.1} parent=5 // pred_check_branch
        %356 = sbr.rel (%p354) target = $region44
      $region43: #{rnn_cls_forward.1} parent=5 // pred_region
        // Predicated region
        $region45: #{rnn_cls_forward.1} parent=43 // pred_check
          %p357 = pneg %p40
        $region46: #{rnn_cls_forward.1} parent=43 // pred_check_branch
          %359 = sbr.rel (%p357) target = $region48
        $region47: #{rnn_cls_forward.1} parent=43 // pred_region
          %s360 = smul.u32 4, %s20
          %p361 = scmp.lt.s32.totalorder %s360, 7
          %s362 = scalar_select %p361, %s360, 7
          %s363 = smul.addr %s362, 8
          %s364 = scalar_lea.vmem %s0, %s363
          %s365 = smul.u32 4, %s20
        $region48: #{rnn_cls_forward.1} parent=43 // pred_fallthru
          _
        // Predicated region
        $region49: #{rnn_cls_forward.1} parent=43 // pred_check
          %p366 = pneg %p68
        $region50: #{rnn_cls_forward.1} parent=43 // pred_check_branch
          %368 = sbr.rel (%p366) target = $region52
        $region51: #{rnn_cls_forward.1} parent=43 // pred_region
          %s369 = ssub.s32 1, %s20
          %s370 = smul.u32 4, %s369
          %p371 = scmp.lt.s32.totalorder %s370, 7
          %s372 = scalar_select %p371, %s370, 7
          %s373 = smul.addr %s372, 8
          %s374 = scalar_lea.vmem %s1, %s373
          %s375 = ssub.s32 1, %s20
          %s376 = smul.u32 4, %s375
        $region52: #{rnn_cls_forward.1} parent=43 // pred_fallthru
          _
        // Predicated region
        $region53: #{rnn_cls_forward.1} parent=43 // pred_check
          %p377 = pneg %p94
        $region54: #{rnn_cls_forward.1} parent=43 // pred_check_branch
          %379 = sbr.rel (%p377) target = $region56
        $region55: #{rnn_cls_forward.1} parent=43 // pred_region
          %s380 = smul.u32 4, %s20
          %p381 = scmp.lt.s32.totalorder %s380, 7
          %s382 = scalar_select %p381, %s380, 7
          %s383 = smul.addr %s382, 8
          %s384 = scalar_lea.vmem %s2, %s383
          %s385 = smul.u32 4, %s20
        $region56: #{rnn_cls_forward.1} parent=43 // pred_fallthru
          _
        // Predicated region
        $region57: #{rnn_cls_forward.1} parent=43 // pred_check
          %p386 = pneg %p122
        $region58: #{rnn_cls_forward.1} parent=43 // pred_check_branch
          %388 = sbr.rel (%p386) target = $region60
        $region59: #{rnn_cls_forward.1} parent=43 // pred_region
          %s389 = ssub.s32 1, %s20
          %s390 = smul.u32 4, %s389
          %p391 = scmp.lt.s32.totalorder %s390, 7
          %s392 = scalar_select %p391, %s390, 7
          %s393 = smul.addr %s392, 8
          %s394 = scalar_lea.vmem %s3, %s393
          %s395 = ssub.s32 1, %s20
          %s396 = smul.u32 4, %s395
        $region60: #{rnn_cls_forward.1} parent=43 // pred_fallthru
          _
      $region44: #{rnn_cls_forward.1} parent=5 // pred_fallthru
        _
      %p397 = scmp.le.s32.totalorder 1, %s20
      %p398 = scmp.lt.s32.totalorder %s20, 3
      %p399 = pnand %p397, %p398
      %p400 = pneg %p399
      // Predicated region
      $region61: #{rnn_cls_forward.1} parent=5 // pred_check
        _
      $region62: #{rnn_cls_forward.1} parent=5 // pred_check_branch
        %402 = sbr.rel (%p399) target = $region64
      $region63: #{rnn_cls_forward.1} parent=5 // pred_region
        %s403 = ssub.s32 %s20, 1
        %s404 = smul.u32 4, %s25
        %p405 = scmp.lt.s32.totalorder %s404, 7
        %s406 = scalar_select %p405, %s404, 7
        %s407 = smul.addr %s406, 8
        %s408 = scalar_lea.vmem %s0, %s407
        %p409 = pneg %p46
        %p410 = pneg %p43
        %s411 = ssub.s32 1, %s25
        %s412 = smul.u32 4, %s411
        %p413 = scmp.lt.s32.totalorder %s412, 7
        %s414 = scalar_select %p413, %s412, 7
        %s415 = smul.addr %s414, 8
        %s416 = scalar_lea.vmem %s1, %s415
        %p417 = pneg %p74
        %p418 = pneg %p71
        %s419 = smul.u32 4, %s25
        %p420 = scmp.lt.s32.totalorder %s419, 7
        %s421 = scalar_select %p420, %s419, 7
        %s422 = smul.addr %s421, 8
        %s423 = scalar_lea.vmem %s2, %s422
        %p424 = pneg %p100
        %p425 = pneg %p97
        %s426 = ssub.s32 1, %s25
        %s427 = smul.u32 4, %s426
        %p428 = scmp.lt.s32.totalorder %s427, 7
        %s429 = scalar_select %p428, %s427, 7
        %s430 = smul.addr %s429, 8
        %s431 = scalar_lea.vmem %s3, %s430
        %p432 = pneg %p128
        %p433 = pneg %p125
        %p434 = pneg %p149
        %p435 = pneg %p146
        %p436 = pneg %p170
        %p437 = pneg %p167
        %p438 = pneg %p191
        %p439 = pneg %p188
        %p440 = pneg %p212
        %p441 = pneg %p209
        %p442 = pneg %p233
        %p443 = pneg %p230
        %p444 = pneg %p254
        %p445 = pneg %p251
        %p446 = pneg %p275
        %p447 = pneg %p272
        %p448 = pneg %p296
        %p449 = pneg %p293
        %p450 = pneg %p317
        %p451 = pneg %p314
        %s452 = smul.u32 4, %s25
        %p453 = scmp.lt.s32.totalorder %s452, 7
        %s454 = scalar_select %p453, %s452, 7
        %s455 = smul.addr %s454, 8
        %s456 = scalar_lea.vmem %s0, %s455
        %s457 = smul.u32 4, %s25
        %s458 = ssub.s32 1, %s25
        %s459 = smul.u32 4, %s458
        %p460 = scmp.lt.s32.totalorder %s459, 7
        %s461 = scalar_select %p460, %s459, 7
        %s462 = smul.addr %s461, 8
        %s463 = scalar_lea.vmem %s1, %s462
        %s464 = ssub.s32 1, %s25
        %s465 = smul.u32 4, %s464
        %s466 = smul.u32 4, %s25
        %p467 = scmp.lt.s32.totalorder %s466, 7
        %s468 = scalar_select %p467, %s466, 7
        %s469 = smul.addr %s468, 8
        %s470 = scalar_lea.vmem %s2, %s469
        %s471 = smul.u32 4, %s25
        %s472 = ssub.s32 1, %s25
        %s473 = smul.u32 4, %s472
        %p474 = scmp.lt.s32.totalorder %s473, 7
        %s475 = scalar_select %p474, %s473, 7
        %s476 = smul.addr %s475, 8
        %s477 = scalar_lea.vmem %s3, %s476
        %s478 = ssub.s32 1, %s25
        %s479 = smul.u32 4, %s478
        %p481 = scmp.eq.s32.totalorder %s25, 0
        // Predicated region
        $region65: #{rnn_cls_forward.1} parent=63 // pred_check
          %p482 = pneg %p481
        $region66: #{rnn_cls_forward.1} parent=63 // pred_check_branch
          %484 = sbr.rel (%p482) target = $region68
        $region67: #{rnn_cls_forward.1} parent=63 // pred_region
          %vm485 = vcmask 261120
          %486 = vst.msk [vmem:[#allocation2] sm:$0xff] %vm485, 0.0
          %487 = vst.msk [vmem:[#allocation3] sm:$0xff] %vm485, 0.0
        $region68: #{rnn_cls_forward.1} parent=63 // pred_fallthru
          _
        %v488 = vld [vmem:[%s4] sm:$0xf]
        %v489 = vld [vmem:[%s4 + $0x4] sm:$0xf]
        %v490 = vld [vmem:[%s4 + $0x8] sm:$0xf]
        %v491 = vld [vmem:[%s4 + $0xc] sm:$0xf]
        %v492 = vld [vmem:[%s5] sm:$0xf]
        %v493 = vld [vmem:[%s5 + $0x4] sm:$0xf]
        %v494 = vld [vmem:[%s5 + $0x8] sm:$0xf]
        %v495 = vld [vmem:[%s5 + $0xc] sm:$0xf]
        %v496 = vld [vmem:[#allocation2] sm:$0xff]
        %v497 = vld [vmem:[#allocation3] sm:$0xff]
        %v498 = vld [vmem:[%s456] sm:$0xff]
        %v499 = vld [vmem:[%s470] sm:$0xff]
        %s500 = scalar_lea.vmem %s463, 24
        %v501 = vld [vmem:[%s500] sm:$0xff]
        %s502 = scalar_lea.vmem %s477, 24
        %v503 = vld [vmem:[%s502] sm:$0xff]
        %v504 = vpack.c.bf16 %v496, %v496
        %v509 = vunpack.c.l.b16 %v488
        %v510 = vunpack.c.l.b16 %v489
        %v511 = vunpack.c.l.b16 %v490
        %v512 = vunpack.c.l.b16 %v491
        %v513 = vpack.c.b16 %v510, %v509
        %v514 = vpack.c.b16 %v512, %v511
        %vm517 = vcmask 261120
        %v519 = vsel %vm517, %v504, 0
        %521 = vmatprep.subr.bf16.mxu0 0
        %522 = vmatpush1.bf16.msra.mxu0 %v513
        %523 = vmatprep.subr.bf16.mxu0 0
        %524 = vmatpush1.bf16.msra.mxu0 %v514
        %525 = vmatprep.subr.bf16.mxu0 0
        %526 = vmatpush1.bf16.msra.mxu0 0
        %527 = vmatprep.subr.bf16.mxu0 0
        %528 = vmatpush1.bf16.msra.mxu0 0
        %529 = vmatprep.subr.bf16.mxu0 0
        %530 = vmatpush1.bf16.msra.mxu0 0
        %531 = vmatprep.subr.bf16.mxu0 0
        %532 = vmatpush1.bf16.msra.mxu0 0
        %533 = vmatprep.subr.bf16.mxu0 0
        %534 = vmatpush1.bf16.msra.mxu0 0
        %535 = vmatprep.subr.bf16.mxu0 0
        %536 = vmatpush1.bf16.msra.mxu0 0
        %537 = vmatprep.subr.bf16.mxu0 0
        %538 = vmatpush1.bf16.msra.mxu0 0
        %539 = vmatprep.subr.bf16.mxu0 0
        %540 = vmatpush1.bf16.msra.mxu0 0
        %541 = vmatprep.subr.bf16.mxu0 0
        %542 = vmatpush1.bf16.msra.mxu0 0
        %543 = vmatprep.subr.bf16.mxu0 0
        %544 = vmatpush1.bf16.msra.mxu0 0
        %545 = vmatprep.subr.bf16.mxu0 0
        %546 = vmatpush1.bf16.msra.mxu0 0
        %547 = vmatprep.subr.bf16.mxu0 0
        %548 = vmatpush1.bf16.msra.mxu0 0
        %549 = vmatprep.subr.bf16.mxu0 0
        %550 = vmatpush1.bf16.msra.mxu0 0
        %551 = vmatprep.subr.bf16.mxu0 0
        %552 = vmatpush1.bf16.msra.mxu0 0
        %553 = vmatprep.mubr.bf16.mxu0 0
        %554 = vmatmul.mubr.bf16.gmra.mrb[0].mxu0 %v519
        %v555 = vpop.f32.mrb[0].mxu0
        %v556 = vadd.f32 0.0, %v555
        %v557 = vpop.f32.mrb[0].mxu0
        %v558 = vpop.f32.mrb[0].mxu0
        %v559 = vpop.f32.mrb[0].mxu0
        %560 = vdwg.mxu0
        %v561 = vadd.f32 %v498, %v556
        %v562 = vpack.c.bf16 %v497, %v497
        %v567 = vunpack.c.l.b16 %v492
        %v568 = vunpack.c.l.b16 %v493
        %v569 = vunpack.c.l.b16 %v494
        %v570 = vunpack.c.l.b16 %v495
        %v571 = vpack.c.b16 %v568, %v567
        %v572 = vpack.c.b16 %v570, %v569
        %v576 = vsel %vm517, %v562, 0
        %578 = vmatprep.subr.bf16.mxu0 0
        %579 = vmatpush1.bf16.msra.mxu0 %v571
        %580 = vmatprep.subr.bf16.mxu0 0
        %581 = vmatpush1.bf16.msra.mxu0 %v572
        %582 = vmatprep.subr.bf16.mxu0 0
        %583 = vmatpush1.bf16.msra.mxu0 0
        %584 = vmatprep.subr.bf16.mxu0 0
        %585 = vmatpush1.bf16.msra.mxu0 0
        %586 = vmatprep.subr.bf16.mxu0 0
        %587 = vmatpush1.bf16.msra.mxu0 0
        %588 = vmatprep.subr.bf16.mxu0 0
        %589 = vmatpush1.bf16.msra.mxu0 0
        %590 = vmatprep.subr.bf16.mxu0 0
        %591 = vmatpush1.bf16.msra.mxu0 0
        %592 = vmatprep.subr.bf16.mxu0 0
        %593 = vmatpush1.bf16.msra.mxu0 0
        %594 = vmatprep.subr.bf16.mxu0 0
        %595 = vmatpush1.bf16.msra.mxu0 0
        %596 = vmatprep.subr.bf16.mxu0 0
        %597 = vmatpush1.bf16.msra.mxu0 0
        %598 = vmatprep.subr.bf16.mxu0 0
        %599 = vmatpush1.bf16.msra.mxu0 0
        %600 = vmatprep.subr.bf16.mxu0 0
        %601 = vmatpush1.bf16.msra.mxu0 0
        %602 = vmatprep.subr.bf16.mxu0 0
        %603 = vmatpush1.bf16.msra.mxu0 0
        %604 = vmatprep.subr.bf16.mxu0 0
        %605 = vmatpush1.bf16.msra.mxu0 0
        %606 = vmatprep.subr.bf16.mxu0 0
        %607 = vmatpush1.bf16.msra.mxu0 0
        %608 = vmatprep.subr.bf16.mxu0 0
        %609 = vmatpush1.bf16.msra.mxu0 0
        %610 = vmatprep.mubr.bf16.mxu0 0
        %611 = vmatmul.mubr.bf16.gmra.mrb[0].mxu0 %v576
        %v612 = vpop.f32.mrb[0].mxu0
        %v613 = vadd.f32 0.0, %v612
        %v614 = vpop.f32.mrb[0].mxu0
        %v615 = vpop.f32.mrb[0].mxu0
        %v616 = vpop.f32.mrb[0].mxu0
        %617 = vdwg.mxu0
        %v618 = vadd.f32 %v501, %v613
        %v619 = vtanh.pop %v561
        %v620 = vtanh.pop %v618
        %vm621 = vcmp.gt.f32.partialorder %v499, 0.0
        %v622 = vsel %vm621, 1, 0
        %623 = vset.pattern.permute.xlu0 0
        %624 = vperm.xlu0 %623, %v622
        %v625 = vpop.permute.xlu0 %624
        %vm626 = vcmp.eq.s32.totalorder %v625, 1
        %v627 = vsel %vm626, %v619, %v496
        %vm628 = vcmp.gt.f32.partialorder %v503, 0.0
        %v629 = vsel %vm628, 1, 0
        %630 = vset.pattern.permute.xlu0 0
        %631 = vperm.xlu0 %630, %v629
        %v632 = vpop.permute.xlu0 %631
        %vm633 = vcmp.eq.s32.totalorder %v632, 1
        %v634 = vsel %vm633, %v620, %v497
        %s635 = scalar_lea.vmem %s456, 8
        %v636 = vld [vmem:[%s635] sm:$0xff]
        %s637 = scalar_lea.vmem %s470, 8
        %v638 = vld [vmem:[%s637] sm:$0xff]
        %s639 = scalar_lea.vmem %s463, 16
        %v640 = vld [vmem:[%s639] sm:$0xff]
        %s641 = scalar_lea.vmem %s477, 16
        %v642 = vld [vmem:[%s641] sm:$0xff]
        %v643 = vpack.c.bf16 %v627, %v627
        %v645 = vsel %vm517, %v643, 0
        %647 = vmatprep.subr.bf16.mxu0 0
        %648 = vmatpush1.bf16.msra.mxu0 %v513
        %649 = vmatprep.subr.bf16.mxu0 0
        %650 = vmatpush1.bf16.msra.mxu0 %v514
        %651 = vmatprep.subr.bf16.mxu0 0
        %652 = vmatpush1.bf16.msra.mxu0 0
        %653 = vmatprep.subr.bf16.mxu0 0
        %654 = vmatpush1.bf16.msra.mxu0 0
        %655 = vmatprep.subr.bf16.mxu0 0
        %656 = vmatpush1.bf16.msra.mxu0 0
        %657 = vmatprep.subr.bf16.mxu0 0
        %658 = vmatpush1.bf16.msra.mxu0 0
        %659 = vmatprep.subr.bf16.mxu0 0
        %660 = vmatpush1.bf16.msra.mxu0 0
        %661 = vmatprep.subr.bf16.mxu0 0
        %662 = vmatpush1.bf16.msra.mxu0 0
        %663 = vmatprep.subr.bf16.mxu0 0
        %664 = vmatpush1.bf16.msra.mxu0 0
        %665 = vmatprep.subr.bf16.mxu0 0
        %666 = vmatpush1.bf16.msra.mxu0 0
        %667 = vmatprep.subr.bf16.mxu0 0
        %668 = vmatpush1.bf16.msra.mxu0 0
        %669 = vmatprep.subr.bf16.mxu0 0
        %670 = vmatpush1.bf16.msra.mxu0 0
        %671 = vmatprep.subr.bf16.mxu0 0
        %672 = vmatpush1.bf16.msra.mxu0 0
        %673 = vmatprep.subr.bf16.mxu0 0
        %674 = vmatpush1.bf16.msra.mxu0 0
        %675 = vmatprep.subr.bf16.mxu0 0
        %676 = vmatpush1.bf16.msra.mxu0 0
        %677 = vmatprep.subr.bf16.mxu0 0
        %678 = vmatpush1.bf16.msra.mxu0 0
        %679 = vmatprep.mubr.bf16.mxu0 0
        %680 = vmatmul.mubr.bf16.gmra.mrb[0].mxu0 %v645
        %v681 = vpop.f32.mrb[0].mxu0
        %v682 = vadd.f32 0.0, %v681
        %v683 = vpop.f32.mrb[0].mxu0
        %v684 = vpop.f32.mrb[0].mxu0
        %v685 = vpop.f32.mrb[0].mxu0
        %686 = vdwg.mxu0
        %v687 = vadd.f32 %v636, %v682
        %v688 = vpack.c.bf16 %v634, %v634
        %v690 = vsel %vm517, %v688, 0
        %692 = vmatprep.subr.bf16.mxu0 0
        %693 = vmatpush1.bf16.msra.mxu0 %v571
        %694 = vmatprep.subr.bf16.mxu0 0
        %695 = vmatpush1.bf16.msra.mxu0 %v572
        %696 = vmatprep.subr.bf16.mxu0 0
        %697 = vmatpush1.bf16.msra.mxu0 0
        %698 = vmatprep.subr.bf16.mxu0 0
        %699 = vmatpush1.bf16.msra.mxu0 0
        %700 = vmatprep.subr.bf16.mxu0 0
        %701 = vmatpush1.bf16.msra.mxu0 0
        %702 = vmatprep.subr.bf16.mxu0 0
        %703 = vmatpush1.bf16.msra.mxu0 0
        %704 = vmatprep.subr.bf16.mxu0 0
        %705 = vmatpush1.bf16.msra.mxu0 0
        %706 = vmatprep.subr.bf16.mxu0 0
        %707 = vmatpush1.bf16.msra.mxu0 0
        %708 = vmatprep.subr.bf16.mxu0 0
        %709 = vmatpush1.bf16.msra.mxu0 0
        %710 = vmatprep.subr.bf16.mxu0 0
        %711 = vmatpush1.bf16.msra.mxu0 0
        %712 = vmatprep.subr.bf16.mxu0 0
        %713 = vmatpush1.bf16.msra.mxu0 0
        %714 = vmatprep.subr.bf16.mxu0 0
        %715 = vmatpush1.bf16.msra.mxu0 0
        %716 = vmatprep.subr.bf16.mxu0 0
        %717 = vmatpush1.bf16.msra.mxu0 0
        %718 = vmatprep.subr.bf16.mxu0 0
        %719 = vmatpush1.bf16.msra.mxu0 0
        %720 = vmatprep.subr.bf16.mxu0 0
        %721 = vmatpush1.bf16.msra.mxu0 0
        %722 = vmatprep.subr.bf16.mxu0 0
        %723 = vmatpush1.bf16.msra.mxu0 0
        %724 = vmatprep.mubr.bf16.mxu0 0
        %725 = vmatmul.mubr.bf16.gmra.mrb[0].mxu0 %v690
        %v726 = vpop.f32.mrb[0].mxu0
        %v727 = vadd.f32 0.0, %v726
        %v728 = vpop.f32.mrb[0].mxu0
        %v729 = vpop.f32.mrb[0].mxu0
        %v730 = vpop.f32.mrb[0].mxu0
        %731 = vdwg.mxu0
        %v732 = vadd.f32 %v640, %v727
        %v733 = vtanh.pop %v687
        %v734 = vtanh.pop %v732
        %vm735 = vcmp.gt.f32.partialorder %v638, 0.0
        %v736 = vsel %vm735, 1, 0
        %737 = vset.pattern.permute.xlu0 0
        %738 = vperm.xlu0 %737, %v736
        %v739 = vpop.permute.xlu0 %738
        %vm740 = vcmp.eq.s32.totalorder %v739, 1
        %v741 = vsel %vm740, %v733, %v627
        %vm742 = vcmp.gt.f32.partialorder %v642, 0.0
        %v743 = vsel %vm742, 1, 0
        %744 = vset.pattern.permute.xlu0 0
        %745 = vperm.xlu0 %744, %v743
        %v746 = vpop.permute.xlu0 %745
        %vm747 = vcmp.eq.s32.totalorder %v746, 1
        %v748 = vsel %vm747, %v734, %v634
        %s749 = scalar_lea.vmem %s456, 16
        %v750 = vld [vmem:[%s749] sm:$0xff]
        %s751 = scalar_lea.vmem %s470, 16
        %v752 = vld [vmem:[%s751] sm:$0xff]
        %s753 = scalar_lea.vmem %s463, 8
        %v754 = vld [vmem:[%s753] sm:$0xff]
        %s755 = scalar_lea.vmem %s477, 8
        %v756 = vld [vmem:[%s755] sm:$0xff]
        %v757 = vpack.c.bf16 %v741, %v741
        %v759 = vsel %vm517, %v757, 0
        %761 = vmatprep.subr.bf16.mxu0 0
        %762 = vmatpush1.bf16.msra.mxu0 %v513
        %763 = vmatprep.subr.bf16.mxu0 0
        %764 = vmatpush1.bf16.msra.mxu0 %v514
        %765 = vmatprep.subr.bf16.mxu0 0
        %766 = vmatpush1.bf16.msra.mxu0 0
        %767 = vmatprep.subr.bf16.mxu0 0
        %768 = vmatpush1.bf16.msra.mxu0 0
        %769 = vmatprep.subr.bf16.mxu0 0
        %770 = vmatpush1.bf16.msra.mxu0 0
        %771 = vmatprep.subr.bf16.mxu0 0
        %772 = vmatpush1.bf16.msra.mxu0 0
        %773 = vmatprep.subr.bf16.mxu0 0
        %774 = vmatpush1.bf16.msra.mxu0 0
        %775 = vmatprep.subr.bf16.mxu0 0
        %776 = vmatpush1.bf16.msra.mxu0 0
        %777 = vmatprep.subr.bf16.mxu0 0
        %778 = vmatpush1.bf16.msra.mxu0 0
        %779 = vmatprep.subr.bf16.mxu0 0
        %780 = vmatpush1.bf16.msra.mxu0 0
        %781 = vmatprep.subr.bf16.mxu0 0
        %782 = vmatpush1.bf16.msra.mxu0 0
        %783 = vmatprep.subr.bf16.mxu0 0
        %784 = vmatpush1.bf16.msra.mxu0 0
        %785 = vmatprep.subr.bf16.mxu0 0
        %786 = vmatpush1.bf16.msra.mxu0 0
        %787 = vmatprep.subr.bf16.mxu0 0
        %788 = vmatpush1.bf16.msra.mxu0 0
        %789 = vmatprep.subr.bf16.mxu0 0
        %790 = vmatpush1.bf16.msra.mxu0 0
        %791 = vmatprep.subr.bf16.mxu0 0
        %792 = vmatpush1.bf16.msra.mxu0 0
        %793 = vmatprep.mubr.bf16.mxu0 0
        %794 = vmatmul.mubr.bf16.gmra.mrb[0].mxu0 %v759
        %v795 = vpop.f32.mrb[0].mxu0
        %v796 = vadd.f32 0.0, %v795
        %v797 = vpop.f32.mrb[0].mxu0
        %v798 = vpop.f32.mrb[0].mxu0
        %v799 = vpop.f32.mrb[0].mxu0
        %800 = vdwg.mxu0
        %v801 = vadd.f32 %v750, %v796
        %v802 = vpack.c.bf16 %v748, %v748
        %v804 = vsel %vm517, %v802, 0
        %806 = vmatprep.subr.bf16.mxu0 0
        %807 = vmatpush1.bf16.msra.mxu0 %v571
        %808 = vmatprep.subr.bf16.mxu0 0
        %809 = vmatpush1.bf16.msra.mxu0 %v572
        %810 = vmatprep.subr.bf16.mxu0 0
        %811 = vmatpush1.bf16.msra.mxu0 0
        %812 = vmatprep.subr.bf16.mxu0 0
        %813 = vmatpush1.bf16.msra.mxu0 0
        %814 = vmatprep.subr.bf16.mxu0 0
        %815 = vmatpush1.bf16.msra.mxu0 0
        %816 = vmatprep.subr.bf16.mxu0 0
        %817 = vmatpush1.bf16.msra.mxu0 0
        %818 = vmatprep.subr.bf16.mxu0 0
        %819 = vmatpush1.bf16.msra.mxu0 0
        %820 = vmatprep.subr.bf16.mxu0 0
        %821 = vmatpush1.bf16.msra.mxu0 0
        %822 = vmatprep.subr.bf16.mxu0 0
        %823 = vmatpush1.bf16.msra.mxu0 0
        %824 = vmatprep.subr.bf16.mxu0 0
        %825 = vmatpush1.bf16.msra.mxu0 0
        %826 = vmatprep.subr.bf16.mxu0 0
        %827 = vmatpush1.bf16.msra.mxu0 0
        %828 = vmatprep.subr.bf16.mxu0 0
        %829 = vmatpush1.bf16.msra.mxu0 0
        %830 = vmatprep.subr.bf16.mxu0 0
        %831 = vmatpush1.bf16.msra.mxu0 0
        %832 = vmatprep.subr.bf16.mxu0 0
        %833 = vmatpush1.bf16.msra.mxu0 0
        %834 = vmatprep.subr.bf16.mxu0 0
        %835 = vmatpush1.bf16.msra.mxu0 0
        %836 = vmatprep.subr.bf16.mxu0 0
        %837 = vmatpush1.bf16.msra.mxu0 0
        %838 = vmatprep.mubr.bf16.mxu0 0
        %839 = vmatmul.mubr.bf16.gmra.mrb[0].mxu0 %v804
        %v840 = vpop.f32.mrb[0].mxu0
        %v841 = vadd.f32 0.0, %v840
        %v842 = vpop.f32.mrb[0].mxu0
        %v843 = vpop.f32.mrb[0].mxu0
        %v844 = vpop.f32.mrb[0].mxu0
        %845 = vdwg.mxu0
        %v846 = vadd.f32 %v754, %v841
        %v847 = vtanh.pop %v801
        %v848 = vtanh.pop %v846
        %vm849 = vcmp.gt.f32.partialorder %v752, 0.0
        %v850 = vsel %vm849, 1, 0
        %851 = vset.pattern.permute.xlu0 0
        %852 = vperm.xlu0 %851, %v850
        %v853 = vpop.permute.xlu0 %852
        %vm854 = vcmp.eq.s32.totalorder %v853, 1
        %v855 = vsel %vm854, %v847, %v741
        %vm856 = vcmp.gt.f32.partialorder %v756, 0.0
        %v857 = vsel %vm856, 1, 0
        %858 = vset.pattern.permute.xlu0 0
        %859 = vperm.xlu0 %858, %v857
        %v860 = vpop.permute.xlu0 %859
        %vm861 = vcmp.eq.s32.totalorder %v860, 1
        %v862 = vsel %vm861, %v848, %v748
        %s863 = scalar_lea.vmem %s456, 24
        %v864 = vld [vmem:[%s863] sm:$0xff]
        %s865 = scalar_lea.vmem %s470, 24
        %v866 = vld [vmem:[%s865] sm:$0xff]
        %v867 = vld [vmem:[%s463] sm:$0xff]
        %v868 = vld [vmem:[%s477] sm:$0xff]
        %v869 = vpack.c.bf16 %v855, %v855
        %v871 = vsel %vm517, %v869, 0
        %873 = vmatprep.subr.bf16.mxu0 0
        %874 = vmatpush1.bf16.msra.mxu0 %v513
        %875 = vmatprep.subr.bf16.mxu0 0
        %876 = vmatpush1.bf16.msra.mxu0 %v514
        %877 = vmatprep.subr.bf16.mxu0 0
        %878 = vmatpush1.bf16.msra.mxu0 0
        %879 = vmatprep.subr.bf16.mxu0 0
        %880 = vmatpush1.bf16.msra.mxu0 0
        %881 = vmatprep.subr.bf16.mxu0 0
        %882 = vmatpush1.bf16.msra.mxu0 0
        %883 = vmatprep.subr.bf16.mxu0 0
        %884 = vmatpush1.bf16.msra.mxu0 0
        %885 = vmatprep.subr.bf16.mxu0 0
        %886 = vmatpush1.bf16.msra.mxu0 0
        %887 = vmatprep.subr.bf16.mxu0 0
        %888 = vmatpush1.bf16.msra.mxu0 0
        %889 = vmatprep.subr.bf16.mxu0 0
        %890 = vmatpush1.bf16.msra.mxu0 0
        %891 = vmatprep.subr.bf16.mxu0 0
        %892 = vmatpush1.bf16.msra.mxu0 0
        %893 = vmatprep.subr.bf16.mxu0 0
        %894 = vmatpush1.bf16.msra.mxu0 0
        %895 = vmatprep.subr.bf16.mxu0 0
        %896 = vmatpush1.bf16.msra.mxu0 0
        %897 = vmatprep.subr.bf16.mxu0 0
        %898 = vmatpush1.bf16.msra.mxu0 0
        %899 = vmatprep.subr.bf16.mxu0 0
        %900 = vmatpush1.bf16.msra.mxu0 0
        %901 = vmatprep.subr.bf16.mxu0 0
        %902 = vmatpush1.bf16.msra.mxu0 0
        %903 = vmatprep.subr.bf16.mxu0 0
        %904 = vmatpush1.bf16.msra.mxu0 0
        %905 = vmatprep.mubr.bf16.mxu0 0
        %906 = vmatmul.mubr.bf16.gmra.mrb[0].mxu0 %v871
        %v907 = vpop.f32.mrb[0].mxu0
        %v908 = vadd.f32 0.0, %v907
        %v909 = vpop.f32.mrb[0].mxu0
        %v910 = vpop.f32.mrb[0].mxu0
        %v911 = vpop.f32.mrb[0].mxu0
        %912 = vdwg.mxu0
        %v913 = vadd.f32 %v864, %v908
        %v914 = vpack.c.bf16 %v862, %v862
        %v916 = vsel %vm517, %v914, 0
        %918 = vmatprep.subr.bf16.mxu0 0
        %919 = vmatpush1.bf16.msra.mxu0 %v571
        %920 = vmatprep.subr.bf16.mxu0 0
        %921 = vmatpush1.bf16.msra.mxu0 %v572
        %922 = vmatprep.subr.bf16.mxu0 0
        %923 = vmatpush1.bf16.msra.mxu0 0
        %924 = vmatprep.subr.bf16.mxu0 0
        %925 = vmatpush1.bf16.msra.mxu0 0
        %926 = vmatprep.subr.bf16.mxu0 0
        %927 = vmatpush1.bf16.msra.mxu0 0
        %928 = vmatprep.subr.bf16.mxu0 0
        %929 = vmatpush1.bf16.msra.mxu0 0
        %930 = vmatprep.subr.bf16.mxu0 0
        %931 = vmatpush1.bf16.msra.mxu0 0
        %932 = vmatprep.subr.bf16.mxu0 0
        %933 = vmatpush1.bf16.msra.mxu0 0
        %934 = vmatprep.subr.bf16.mxu0 0
        %935 = vmatpush1.bf16.msra.mxu0 0
        %936 = vmatprep.subr.bf16.mxu0 0
        %937 = vmatpush1.bf16.msra.mxu0 0
        %938 = vmatprep.subr.bf16.mxu0 0
        %939 = vmatpush1.bf16.msra.mxu0 0
        %940 = vmatprep.subr.bf16.mxu0 0
        %941 = vmatpush1.bf16.msra.mxu0 0
        %942 = vmatprep.subr.bf16.mxu0 0
        %943 = vmatpush1.bf16.msra.mxu0 0
        %944 = vmatprep.subr.bf16.mxu0 0
        %945 = vmatpush1.bf16.msra.mxu0 0
        %946 = vmatprep.subr.bf16.mxu0 0
        %947 = vmatpush1.bf16.msra.mxu0 0
        %948 = vmatprep.subr.bf16.mxu0 0
        %949 = vmatpush1.bf16.msra.mxu0 0
        %950 = vmatprep.mubr.bf16.mxu0 0
        %951 = vmatmul.mubr.bf16.gmra.mrb[0].mxu0 %v916
        %v952 = vpop.f32.mrb[0].mxu0
        %v953 = vadd.f32 0.0, %v952
        %v954 = vpop.f32.mrb[0].mxu0
        %v955 = vpop.f32.mrb[0].mxu0
        %v956 = vpop.f32.mrb[0].mxu0
        %957 = vdwg.mxu0
        %v958 = vadd.f32 %v867, %v953
        %v959 = vtanh.pop %v913
        %v960 = vtanh.pop %v958
        %vm961 = vcmp.gt.f32.partialorder %v866, 0.0
        %v962 = vsel %vm961, 1, 0
        %963 = vset.pattern.permute.xlu0 0
        %964 = vperm.xlu0 %963, %v962
        %v965 = vpop.permute.xlu0 %964
        %vm966 = vcmp.eq.s32.totalorder %v965, 1
        %v967 = vsel %vm966, %v959, %v855
        %vm968 = vcmp.gt.f32.partialorder %v868, 0.0
        %v969 = vsel %vm968, 1, 0
        %970 = vset.pattern.permute.xlu0 0
        %971 = vperm.xlu0 %970, %v969
        %v972 = vpop.permute.xlu0 %971
        %vm973 = vcmp.eq.s32.totalorder %v972, 1
        %v974 = vsel %vm973, %v960, %v862
        %975 = vst.msk [vmem:[#allocation2] sm:$0xff] %vm517, %v967
        %976 = vst.msk [vmem:[#allocation3] sm:$0xff] %vm517, %v974
        %p977 = scmp.eq.s32.totalorder %s25, 1
        // Predicated region
        $region69: #{rnn_cls_forward.1} parent=63 // pred_check
          %p978 = pneg %p977
        $region70: #{rnn_cls_forward.1} parent=63 // pred_check_branch
          %980 = sbr.rel (%p978) target = $region72
        $region71: #{rnn_cls_forward.1} parent=63 // pred_region
          %v981 = vld [vmem:[%s6] sm:$0xff]
          %v982 = vld [vmem:[%s6 + $0x8] sm:$0xff]
          %v983 = vld [vmem:[%s6 + $0x10] sm:$0xff]
          %v984 = vld [vmem:[%s6 + $0x18] sm:$0xff]
          %v985 = vld [vmem:[%s7] sm:$0xff]
          %v986 = vld [vmem:[%s7 + $0x8] sm:$0xff]
          %v987 = vld [vmem:[%s7 + $0x10] sm:$0xff]
          %v988 = vld [vmem:[%s7 + $0x18] sm:$0xff]
          %v990 = vsel %vm517, %v974, 0
          %992 = vmatprep.subr.mxu0 0.0
          %993 = vmatpush1.msra.mxu0 %v985
          %994 = vmatprep.subr.mxu0 0.0
          %995 = vmatpush1.msra.mxu0 %v986
          %996 = vmatprep.subr.mxu0 0.0
          %997 = vmatpush1.msra.mxu0 %v987
          %998 = vmatprep.subr.mxu0 0.0
          %999 = vmatpush1.msra.mxu0 %v988
          %1000 = vmatprep.subr.mxu0 0.0
          %1001 = vmatpush1.msra.mxu0 0.0
          %1002 = vmatprep.subr.mxu0 0.0
          %1003 = vmatpush1.msra.mxu0 0.0
          %1004 = vmatprep.subr.mxu0 0.0
          %1005 = vmatpush1.msra.mxu0 0.0
          %1006 = vmatprep.subr.mxu0 0.0
          %1007 = vmatpush1.msra.mxu0 0.0
          %1008 = vmatprep.subr.mxu0 0.0
          %1009 = vmatpush1.msra.mxu0 0.0
          %1010 = vmatprep.subr.mxu0 0.0
          %1011 = vmatpush1.msra.mxu0 0.0
          %1012 = vmatprep.subr.mxu0 0.0
          %1013 = vmatpush1.msra.mxu0 0.0
          %1014 = vmatprep.subr.mxu0 0.0
          %1015 = vmatpush1.msra.mxu0 0.0
          %1016 = vmatprep.subr.mxu0 0.0
          %1017 = vmatpush1.msra.mxu0 0.0
          %1018 = vmatprep.subr.mxu0 0.0
          %1019 = vmatpush1.msra.mxu0 0.0
          %1020 = vmatprep.subr.mxu0 0.0
          %1021 = vmatpush1.msra.mxu0 0.0
          %1022 = vmatprep.subr.mxu0 0.0
          %1023 = vmatpush1.msra.mxu0 0.0
          %1024 = vmatprep.subr.mxu0 0.0
          %1025 = vmatpush1.msra.mxu0 0.0
          %1026 = vmatprep.subr.mxu0 0.0
          %1027 = vmatpush1.msra.mxu0 0.0
          %1028 = vmatprep.subr.mxu0 0.0
          %1029 = vmatpush1.msra.mxu0 0.0
          %1030 = vmatprep.subr.mxu0 0.0
          %1031 = vmatpush1.msra.mxu0 0.0
          %1032 = vmatprep.subr.mxu0 0.0
          %1033 = vmatpush1.msra.mxu0 0.0
          %1034 = vmatprep.subr.mxu0 0.0
          %1035 = vmatpush1.msra.mxu0 0.0
          %1036 = vmatprep.subr.mxu0 0.0
          %1037 = vmatpush1.msra.mxu0 0.0
          %1038 = vmatprep.subr.mxu0 0.0
          %1039 = vmatpush1.msra.mxu0 0.0
          %1040 = vmatprep.subr.mxu0 0.0
          %1041 = vmatpush1.msra.mxu0 0.0
          %1042 = vmatprep.subr.mxu0 0.0
          %1043 = vmatpush1.msra.mxu0 0.0
          %1044 = vmatprep.subr.mxu0 0.0
          %1045 = vmatpush1.msra.mxu0 0.0
          %1046 = vmatprep.subr.mxu0 0.0
          %1047 = vmatpush1.msra.mxu0 0.0
          %1048 = vmatprep.subr.mxu0 0.0
          %1049 = vmatpush1.msra.mxu0 0.0
          %1050 = vmatprep.subr.mxu0 0.0
          %1051 = vmatpush1.msra.mxu0 0.0
          %1052 = vmatprep.subr.mxu0 0.0
          %1053 = vmatpush1.msra.mxu0 0.0
          %1054 = vmatprep.subr.mxu0 0.0
          %1055 = vmatpush1.msra.mxu0 0.0
          %1056 = vmatprep.mubr.f32.mxu0 0.0
          %1057 = vmatmul.mubr.f32.gmra.mrb[0].mxu0 %v990
          %v1058 = vpop.f32.mrb[0].mxu0
          %v1059 = vadd.f32 0.0, %v1058
          %v1060 = vpop.f32.mrb[0].mxu0
          %1061 = vdwg.mxu0
          %v1063 = vsel %vm517, %v967, 0
          %1065 = vmatprep.subr.mxu0 0.0
          %1066 = vmatpush1.msra.mxu0 %v981
          %1067 = vmatprep.subr.mxu0 0.0
          %1068 = vmatpush1.msra.mxu0 %v982
          %1069 = vmatprep.subr.mxu0 0.0
          %1070 = vmatpush1.msra.mxu0 %v983
          %1071 = vmatprep.subr.mxu0 0.0
          %1072 = vmatpush1.msra.mxu0 %v984
          %1073 = vmatprep.subr.mxu0 0.0
          %1074 = vmatpush1.msra.mxu0 0.0
          %1075 = vmatprep.subr.mxu0 0.0
          %1076 = vmatpush1.msra.mxu0 0.0
          %1077 = vmatprep.subr.mxu0 0.0
          %1078 = vmatpush1.msra.mxu0 0.0
          %1079 = vmatprep.subr.mxu0 0.0
          %1080 = vmatpush1.msra.mxu0 0.0
          %1081 = vmatprep.subr.mxu0 0.0
          %1082 = vmatpush1.msra.mxu0 0.0
          %1083 = vmatprep.subr.mxu0 0.0
          %1084 = vmatpush1.msra.mxu0 0.0
          %1085 = vmatprep.subr.mxu0 0.0
          %1086 = vmatpush1.msra.mxu0 0.0
          %1087 = vmatprep.subr.mxu0 0.0
          %1088 = vmatpush1.msra.mxu0 0.0
          %1089 = vmatprep.subr.mxu0 0.0
          %1090 = vmatpush1.msra.mxu0 0.0
          %1091 = vmatprep.subr.mxu0 0.0
          %1092 = vmatpush1.msra.mxu0 0.0
          %1093 = vmatprep.subr.mxu0 0.0
          %1094 = vmatpush1.msra.mxu0 0.0
          %1095 = vmatprep.subr.mxu0 0.0
          %1096 = vmatpush1.msra.mxu0 0.0
          %1097 = vmatprep.subr.mxu0 0.0
          %1098 = vmatpush1.msra.mxu0 0.0
          %1099 = vmatprep.subr.mxu0 0.0
          %1100 = vmatpush1.msra.mxu0 0.0
          %1101 = vmatprep.subr.mxu0 0.0
          %1102 = vmatpush1.msra.mxu0 0.0
          %1103 = vmatprep.subr.mxu0 0.0
          %1104 = vmatpush1.msra.mxu0 0.0
          %1105 = vmatprep.subr.mxu0 0.0
          %1106 = vmatpush1.msra.mxu0 0.0
          %1107 = vmatprep.subr.mxu0 0.0
          %1108 = vmatpush1.msra.mxu0 0.0
          %1109 = vmatprep.subr.mxu0 0.0
          %1110 = vmatpush1.msra.mxu0 0.0
          %1111 = vmatprep.subr.mxu0 0.0
          %1112 = vmatpush1.msra.mxu0 0.0
          %1113 = vmatprep.subr.mxu0 0.0
          %1114 = vmatpush1.msra.mxu0 0.0
          %1115 = vmatprep.subr.mxu0 0.0
          %1116 = vmatpush1.msra.mxu0 0.0
          %1117 = vmatprep.subr.mxu0 0.0
          %1118 = vmatpush1.msra.mxu0 0.0
          %1119 = vmatprep.subr.mxu0 0.0
          %1120 = vmatpush1.msra.mxu0 0.0
          %1121 = vmatprep.subr.mxu0 0.0
          %1122 = vmatpush1.msra.mxu0 0.0
          %1123 = vmatprep.subr.mxu0 0.0
          %1124 = vmatpush1.msra.mxu0 0.0
          %1125 = vmatprep.subr.mxu0 0.0
          %1126 = vmatpush1.msra.mxu0 0.0
          %1127 = vmatprep.subr.mxu0 0.0
          %1128 = vmatpush1.msra.mxu0 0.0
          %1129 = vmatprep.mubr.f32.mxu0 0.0
          %1130 = vmatmul.mubr.f32.gmra.mrb[0].mxu0 %v1063
          %v1131 = vpop.f32.mrb[0].mxu0
          %v1132 = vadd.f32 %v1059, %v1131
          %v1133 = vpop.f32.mrb[0].mxu0
          %1134 = vdwg.mxu0
          %v1135 = vld [vmem:[%s8] sm:$0x1]
          %v1137 = vlaneseq
          %v1138 = vshrl.u32 %v1137, 7
          %v1139 = vsub.s32 0, %v1138
          %v1140 = vrot.slane %v1135, %v1139
          %v1142 = vadd.f32 %v1132, %v1140
          %vm1143 = vcmask 15360
          %1144 = vst.msk [vmem:[%s11] sm:$0xff] %vm1143, %v1142
          %v1145 = vsel %vm1143, %v1142, -inf
          %1146 = vmax.xlane.f32.xlu0 %v1145
          %v1147 = vpop.xlane.xlu0 %1146
          %v1148 = vsub.f32 %v1142, %v1147
          %v1149 = vmul.f32 %v1148, 1.442695
          %v1150 = vpow.pop %v1149
          %v1151 = vsel %vm1143, %v1150, 0.0
          %1152 = vadd.xlane.f32.xlu0 %v1151
          %v1153 = vpop.xlane.xlu0 %1152
          %v1154 = vlog2.pop %v1153
          %v1155 = vmul.f32 %v1154, 0.6931472
          %v1156 = vadd.f32 %v1147, %v1155
          %v1157 = vld [vmem:[%s9] sm:$0xff]
          %v1158 = vmul.f32 %v1142, %v1157
          %v1159 = vsel %vm1143, %v1158, 0.0
          %1160 = vadd.xlane.f32.xlu0 %v1159
          %v1161 = vpop.xlane.xlu0 %1160
          %v1162 = vsub.f32 %v1156, %v1161
          %v1163 = vld [vmem:[%s10] sm:$0xff]
          %v1164 = vmul.f32 %v1162, %v1163
          %vm1165 = vcmask 7168
          %v1166 = vsel %vm1165, %v1164, 0.0
          %v1167 = vrot.slane %v1166, 4
          %v1168 = vadd.f32 %v1166, %v1167
          %v1169 = vrot.slane %v1168, 2
          %v1170 = vadd.f32 %v1168, %v1169
          %v1171 = vrot.slane %v1170, 1
          %v1172 = vadd.f32 %v1170, %v1171
          %vm1173 = vcmask 0
          %1174 = vst.msk [vmem:[#allocation4] sm:$0x1] %vm1173, %v1172
        $region72: #{rnn_cls_forward.1} parent=63 // pred_fallthru
          _
        // Predicated region
        $region73: #{rnn_cls_forward.1} parent=63 // pred_check
          %p1175 = pneg %p293
        $region74: #{rnn_cls_forward.1} parent=63 // pred_check_branch
          %1177 = sbr.rel (%p1175) target = $region76
        $region75: #{rnn_cls_forward.1} parent=63 // pred_region
          _
        $region76: #{rnn_cls_forward.1} parent=63 // pred_fallthru
          _
        // Predicated region
        $region77: #{rnn_cls_forward.1} parent=63 // pred_check
          %p1178 = pneg %p314
        $region78: #{rnn_cls_forward.1} parent=63 // pred_check_branch
          %1180 = sbr.rel (%p1178) target = $region80
        $region79: #{rnn_cls_forward.1} parent=63 // pred_region
          %s1182 = ssub.s32 16, 16
          %1183 = vsyncadd [#allocation5], %s1182
          %s1185 = sshll.u32 [#allocation4], 4
          %s1186 = int_to_ptr.vmem [resolvable:$true] %s1185
          %1188 = dma.vmem_to_hbm [thread:$0]  %s1186, 16, %s12, [#allocation5]
        $region80: #{rnn_cls_forward.1} parent=63 // pred_fallthru
          _
        // Predicated region
        $region81: #{rnn_cls_forward.1} parent=63 // pred_check
          %p1189 = pneg %p293
        $region82: #{rnn_cls_forward.1} parent=63 // pred_check_branch
          %1191 = sbr.rel (%p1189) target = $region84
        $region83: #{rnn_cls_forward.1} parent=63 // pred_region
          _
        $region84: #{rnn_cls_forward.1} parent=63 // pred_fallthru
          _
        // Predicated region
        $region85: #{rnn_cls_forward.1} parent=63 // pred_check
          %p1192 = pneg %p314
        $region86: #{rnn_cls_forward.1} parent=63 // pred_check_branch
          %1194 = sbr.rel (%p1192) target = $region88
        $region87: #{rnn_cls_forward.1} parent=63 // pred_region
          %1195 = dma.done [#allocation5], 16
        $region88: #{rnn_cls_forward.1} parent=63 // pred_fallthru
          _
      $region64: #{rnn_cls_forward.1} parent=5 // pred_fallthru
        _
      %p1196 = scmp.le.s32.totalorder 2, %s20
      // Predicated region
      $region89: #{rnn_cls_forward.1} parent=5 // pred_check
        %p1197 = pneg %p1196
      $region90: #{rnn_cls_forward.1} parent=5 // pred_check_branch
        %1199 = sbr.rel (%p1197) target = $region92
      $region91: #{rnn_cls_forward.1} parent=5 // pred_region
        %s1200 = ssub.s32 %s20, 2
      $region92: #{rnn_cls_forward.1} parent=5 // pred_fallthru
        _
    $region6: #{rnn_cls_forward.1} parent=1 // loop_footer
      %s24 = sadd.s32 1, %s20
    $region7: #{rnn_cls_forward.1} parent=1 // loop_footer_branch
      %19 = sbr.rel target = $region3
    $region8: #{rnn_cls_forward.1} parent=1 // loop_exit
      _
    %1201 = vsyncpa [#allocation5], 1
    %s1202 = scalar_lea.sflag [#allocation5], 1
    %1203 = vsyncpa %s1202, 1

</llo_original>
